<compile_context>
chip_gen: v5e
topology: v5e:2x2
jax: 0.10.0
libtpu: 0.0.40
codegen_flags: <defaults>
</compile_context>

<pallas_src>
import functools

import jax
import jax.numpy as jnp
from jax.experimental import pallas as pl
from jax.experimental.pallas import tpu as pltpu


_NEG_BIG = -1e30


def _round_up(v, m):
    return (v + m - 1) // m * m


# ---------------------------------------------------------------------------
# Fused GATConv kernel: one grid step = one tile of dst rows, all heads.
# ---------------------------------------------------------------------------
def _gat_conv_kernel(x_tile_ref, x_full_ref, w_ref, wsrc_ref, wdst_ref,
                     bias_ref, adjb_ref, o_ref, *, heads, f_out, apply_relu):
    # Feature transform for ALL source nodes, lane-dense [N_pad, heads*f_out].
    # (Recomputed per dst tile so the grid axis stays safely "parallel" for
    # megacore sharding; extra cost ~ Cin/TILE_M of the attention work and
    # zero for the single-tile demo grid.)
    xw = jnp.dot(x_full_ref[...], w_ref[...],
                 preferred_element_type=jnp.float32)              # [N, H*F]
    # Folded attention logits straight off the MXU (no XLU reductions).
    a_src = jnp.dot(x_full_ref[...], wsrc_ref[...],
                    preferred_element_type=jnp.float32)            # [N, H]
    a_dst = jnp.dot(x_tile_ref[...], wdst_ref[...],
                    preferred_element_type=jnp.float32)            # [TM, H]
    adj_bias = adjb_ref[...]                                       # [TM, N]

    outs = []
    for h in range(heads):                       # static unroll over heads
        # e[i, j] = LeakyReLU(a_dst[i] + a_src[j], 0.2)  (+ 0 / -1e30 mask)
        s = a_dst[:, h:h + 1] + jnp.transpose(a_src[:, h:h + 1])   # [TM, N]
        s = jnp.where(s > 0, s, 0.2 * s)
        s = s + adj_bias
        row_max = jnp.max(s, axis=-1, keepdims=True)
        p = jnp.exp(s - row_max)                 # masked entries underflow to 0
        denom = jnp.sum(p, axis=-1, keepdims=True)
        attn = p * pl.reciprocal(denom, approx=True)
        # TODO(synk): attention dropout skipped (module evaluated in eval mode).
        outs.append(jnp.dot(attn, xw[:, h * f_out:(h + 1) * f_out],
                            preferred_element_type=jnp.float32))   # [TM, F]

    out = jnp.concatenate(outs, axis=-1) if heads > 1 else outs[0]
    out = out + bias_ref[...]
    if apply_relu:
        out = jnp.maximum(out, 0.0)
    o_ref[...] = out.astype(o_ref.dtype)          # single lane-dense store


def gat_conv(x_pad, adj_bias, w, att_src, att_dst, bias, *, heads, f_out,
             apply_relu, tile_m):
    """One GATConv layer (concat=True).  x_pad:[N_pad,Cin] -> [N_pad, H*F]."""
    n_pad, cin = x_pad.shape
    hf = heads * f_out

    # Fold att_src / att_dst into the weight so per-node logits are a matmul.
    w_r = w.reshape(cin, heads, f_out)
    w_src = jnp.einsum("chf,hf->ch", w_r, att_src.reshape(heads, f_out))
    w_dst = jnp.einsum("chf,hf->ch", w_r, att_dst.reshape(heads, f_out))
    bias2d = bias.reshape(1, hf)

    grid = (n_pad // tile_m,)
    return pl.pallas_call(
        functools.partial(_gat_conv_kernel, heads=heads, f_out=f_out,
                          apply_relu=apply_relu),
        grid=grid,
        in_specs=[
            pl.BlockSpec((tile_m, cin), lambda i: (i, 0)),    # x (dst tile)
            pl.BlockSpec((n_pad, cin), lambda i: (0, 0)),     # x (all src nodes)
            pl.BlockSpec((cin, hf), lambda i: (0, 0)),        # W
            pl.BlockSpec((cin, heads), lambda i: (0, 0)),     # W @ att_src
            pl.BlockSpec((cin, heads), lambda i: (0, 0)),     # W @ att_dst
            pl.BlockSpec((1, hf), lambda i: (0, 0)),          # bias
            pl.BlockSpec((tile_m, n_pad), lambda i: (i, 0)),  # additive adj bias
        ],
        out_specs=pl.BlockSpec((tile_m, hf), lambda i: (i, 0)),
        out_shape=jax.ShapeDtypeStruct((n_pad, hf), jnp.float32),
        compiler_params=pltpu.CompilerParams(
            dimension_semantics=("parallel",),
            vmem_limit_bytes=32 * 1024 * 1024),
    )(x_pad, x_pad, w, w_src, w_dst, bias2d, adj_bias)


# ---------------------------------------------------------------------------
# Full GAT forward (inference)
# ---------------------------------------------------------------------------
def gat_forward(x, edge_index, params, *, heads1=8):
    n, cin = x.shape
    hid = params["att_src1"].shape[-1]
    out_c = params["att_src2"].shape[-1]

    # Choose dst-row tiling (sublane-aligned); pad node count if necessary.
    if n <= 128:
        tile_m = _round_up(n, 8)
        n_pad = tile_m
    else:
        tile_m = 128
        n_pad = _round_up(n, 128)
    if n_pad != n:
        x = jnp.zeros((n_pad, cin), x.dtype).at[:n].set(x)

    # Additive adjacency bias (0 = edge/self-loop, -1e30 = no edge), shared by
    # both layers.  Self loops on every row keep the softmax denominator > 0.
    src, dst = edge_index[0], edge_index[1]
    adj_bias = jnp.full((n_pad, n_pad), _NEG_BIG, jnp.float32)
    adj_bias = adj_bias.at[dst, src].set(0.0)
    diag = jnp.arange(n_pad)
    adj_bias = adj_bias.at[diag, diag].set(0.0)

    # dropout(x) -> identity in eval mode
    h = gat_conv(x, adj_bias, params["w1"], params["att_src1"],
                 params["att_dst1"], params["bias1"],
                 heads=heads1, f_out=hid, apply_relu=True, tile_m=tile_m)
    # dropout(h) -> identity in eval mode
    y = gat_conv(h, adj_bias, params["w2"], params["att_src2"],
                 params["att_dst2"], params["bias2"],
                 heads=1, f_out=out_c, apply_relu=False, tile_m=tile_m)
    return y[:n]


# ---------------------------------------------------------------------------
# Pure-JAX reference (same math, no Pallas) for a correctness check.
# ---------------------------------------------------------------------------
def _ref_conv(x, adj, w, att_src, att_dst, bias, heads, f_out, relu):
    n = x.shape[0]
    xw = (x @ w).reshape(n, heads, f_out)
    a_s = jnp.sum(xw * att_src.reshape(1, heads, f_out), -1)   # [N, H]
    a_d = jnp.sum(xw * att_dst.reshape(1, heads, f_out), -1)   # [N, H]
    scores = a_d[:, None, :] + a_s[None, :, :]                 # [N, N, H]
    scores = jnp.where(scores > 0, scores, 0.2 * scores)
    mask = (adj > 0)[:, :, None]
    scores = jnp.where(mask, scores, -1e30)
    scores = scores - jnp.max(scores, axis=1, keepdims=True)
    p = jnp.where(mask, jnp.exp(scores), 0.0)
    attn = p / jnp.sum(p, axis=1, keepdims=True)               # [N, N, H]
    out = jnp.einsum("ijh,jhf->ihf", attn, xw).reshape(n, heads * f_out)
    out = out + bias
    return jnp.maximum(out, 0.0) if relu else out


def gat_reference(x, edge_index, params, heads1=8):
    n = x.shape[0]
    adj = jnp.zeros((n, n), jnp.float32).at[edge_index[1], edge_index[0]].set(1.0)
    adj = jnp.maximum(adj, jnp.eye(n, dtype=jnp.float32))
    hid = params["att_src1"].shape[-1]
    out_c = params["att_src2"].shape[-1]
    h = _ref_conv(x, adj, params["w1"], params["att_src1"], params["att_dst1"],
                  params["bias1"], heads1, hid, True)
    return _ref_conv(h, adj, params["w2"], params["att_src2"], params["att_dst2"],
                     params["bias2"], 1, out_c, False)


if __name__ == "__main__":
    # small shapes consistent with the module
    N, E = 32, 64
    in_channels, hidden_channels, out_channels, heads = 16, 16, 8, 8

    key = jax.random.PRNGKey(0)
    ks = jax.random.split(key, 12)

    x = jax.random.normal(ks[0], (N, in_channels), jnp.float32)
    edge_index = jnp.stack([
        jax.random.randint(ks[1], (E,), 0, N, dtype=jnp.int32),
        jax.random.randint(ks[2], (E,), 0, N, dtype=jnp.int32),
    ], axis=0)

    params = {
        # conv1: GATConv(in, hidden, heads=8)
        "w1": 0.1 * jax.random.normal(ks[3], (in_channels, heads * hidden_channels), jnp.float32),
        "att_src1": 0.1 * jax.random.normal(ks[4], (1, heads, hidden_channels), jnp.float32),
        "att_dst1": 0.1 * jax.random.normal(ks[5], (1, heads, hidden_channels), jnp.float32),
        "bias1": 0.1 * jax.random.normal(ks[6], (heads * hidden_channels,), jnp.float32),
        # conv2: GATConv(hidden*8, out, heads=1, concat=True)
        "w2": 0.1 * jax.random.normal(ks[7], (heads * hidden_channels, out_channels), jnp.float32),
        "att_src2": 0.1 * jax.random.normal(ks[8], (1, 1, out_channels), jnp.float32),
        "att_dst2": 0.1 * jax.random.normal(ks[9], (1, 1, out_channels), jnp.float32),
        "bias2": 0.1 * jax.random.normal(ks[10], (out_channels,), jnp.float32),
    }

    out = jax.block_until_ready(gat_forward(x, edge_index, params, heads1=heads))
    ref = gat_reference(x, edge_index, params, heads1=heads)

    assert out.shape == (N, out_channels), out.shape
    # Tolerance accounts for pl.reciprocal(approx=True) in the softmax.
    assert jnp.allclose(out, ref, atol=5e-3, rtol=5e-3), \
        float(jnp.max(jnp.abs(out - ref)))
    print("KERNEL_OK")
</pallas_src>

<mosaic_0001>
module attributes {stable_mosaic.version = 11 : i64} {
  func.func @_gat_conv_kernel(%arg0: i32, %arg1: memref<32x16xf32, #tpu.memory_space<vmem>>, %arg2: memref<32x16xf32, #tpu.memory_space<vmem>>, %arg3: memref<16x128xf32, #tpu.memory_space<vmem>>, %arg4: memref<16x8xf32, #tpu.memory_space<vmem>>, %arg5: memref<16x8xf32, #tpu.memory_space<vmem>>, %arg6: memref<1x128xf32, #tpu.memory_space<vmem>>, %arg7: memref<32x32xf32, #tpu.memory_space<vmem>>, %arg8: memref<32x128xf32, #tpu.memory_space<vmem>>) attributes {dimension_semantics = [#tpu.dimension_semantics<parallel>], iteration_bounds = array<i64: 1>, scalar_prefetch = 0 : i64, scratch_operands = 0 : i64, tpu.core_type = #tpu.core_type<tc>, window_params = [{transform_indices = @transform_0, window_bounds = array<i64: 32, 16>}, {pipeline_mode = #tpu.pipeline_mode<synchronous>, transform_indices = @transform_1, window_bounds = array<i64: 32, 16>}, {pipeline_mode = #tpu.pipeline_mode<synchronous>, transform_indices = @transform_2, window_bounds = array<i64: 16, 128>}, {pipeline_mode = #tpu.pipeline_mode<synchronous>, transform_indices = @transform_3, window_bounds = array<i64: 16, 8>}, {pipeline_mode = #tpu.pipeline_mode<synchronous>, transform_indices = @transform_4, window_bounds = array<i64: 16, 8>}, {pipeline_mode = #tpu.pipeline_mode<synchronous>, transform_indices = @transform_5, window_bounds = array<i64: 1, 128>}, {transform_indices = @transform_6, window_bounds = array<i64: 32, 32>}, {transform_indices = @transform_7, window_bounds = array<i64: 32, 128>}]} {
    %c0 = arith.constant 0 : index
    %c0_0 = arith.constant 0 : index
    %0 = vector.load %arg2[%c0, %c0_0] : memref<32x16xf32, #tpu.memory_space<vmem>>, vector<32x16xf32>
    %c0_1 = arith.constant 0 : index
    %c0_2 = arith.constant 0 : index
    %1 = vector.load %arg3[%c0_1, %c0_2] : memref<16x128xf32, #tpu.memory_space<vmem>>, vector<16x128xf32>
    %cst = arith.constant dense<0.000000e+00> : vector<32x128xf32>
    %2 = tpu.matmul %0, %1, %cst {dimension_numbers = #tpu.dot_dimension_numbers<[1], [0], [0], [1], [0, 0, 1, 1], [], []>} : vector<32x16xf32>, vector<16x128xf32>, vector<32x128xf32> -> vector<32x128xf32>
    %c0_3 = arith.constant 0 : index
    %c0_4 = arith.constant 0 : index
    %3 = vector.load %arg2[%c0_3, %c0_4] : memref<32x16xf32, #tpu.memory_space<vmem>>, vector<32x16xf32>
    %c0_5 = arith.constant 0 : index
    %c0_6 = arith.constant 0 : index
    %4 = vector.load %arg4[%c0_5, %c0_6] : memref<16x8xf32, #tpu.memory_space<vmem>>, vector<16x8xf32>
    %cst_7 = arith.constant dense<0.000000e+00> : vector<32x8xf32>
    %5 = tpu.matmul %3, %4, %cst_7 {dimension_numbers = #tpu.dot_dimension_numbers<[1], [0], [0], [1], [0, 0, 1, 1], [], []>} : vector<32x16xf32>, vector<16x8xf32>, vector<32x8xf32> -> vector<32x8xf32>
    %c0_8 = arith.constant 0 : index
    %c0_9 = arith.constant 0 : index
    %6 = vector.load %arg1[%c0_8, %c0_9] : memref<32x16xf32, #tpu.memory_space<vmem>>, vector<32x16xf32>
    %c0_10 = arith.constant 0 : index
    %c0_11 = arith.constant 0 : index
    %7 = vector.load %arg5[%c0_10, %c0_11] : memref<16x8xf32, #tpu.memory_space<vmem>>, vector<16x8xf32>
    %cst_12 = arith.constant dense<0.000000e+00> : vector<32x8xf32>
    %8 = tpu.matmul %6, %7, %cst_12 {dimension_numbers = #tpu.dot_dimension_numbers<[1], [0], [0], [1], [0, 0, 1, 1], [], []>} : vector<32x16xf32>, vector<16x8xf32>, vector<32x8xf32> -> vector<32x8xf32>
    %c0_13 = arith.constant 0 : index
    %c0_14 = arith.constant 0 : index
    %9 = vector.load %arg7[%c0_13, %c0_14] : memref<32x32xf32, #tpu.memory_space<vmem>>, vector<32x32xf32>
    %10 = vector.extract_strided_slice %8 {offsets = [0, 0], sizes = [32, 1], strides = [1, 1]} : vector<32x8xf32> to vector<32x1xf32>
    %11 = vector.extract_strided_slice %5 {offsets = [0, 0], sizes = [32, 1], strides = [1, 1]} : vector<32x8xf32> to vector<32x1xf32>
    %12 = tpu.transpose %11, [1, 0] : vector<32x1xf32> -> vector<1x32xf32>
    %13 = vector.broadcast %10 : vector<32x1xf32> to vector<32x32xf32>
    %14 = vector.broadcast %12 : vector<1x32xf32> to vector<32x32xf32>
    %15 = arith.addf %13, %14 : vector<32x32xf32>
    %cst_15 = arith.constant 0.000000e+00 : f32
    %16 = vector.broadcast %cst_15 : f32 to vector<32x32xf32>
    %17 = arith.cmpf ogt, %15, %16 : vector<32x32xf32>
    %cst_16 = arith.constant 2.000000e-01 : f32
    %18 = vector.broadcast %cst_16 : f32 to vector<32x32xf32>
    %19 = arith.mulf %18, %15 : vector<32x32xf32>
    %20 = arith.select %17, %15, %19 : vector<32x32xi1>, vector<32x32xf32>
    %21 = arith.addf %20, %9 : vector<32x32xf32>
    %cst_17 = arith.constant dense<0xFF800000> : vector<32xf32>
    %22 = vector.multi_reduction <maximumf>, %21, %cst_17 [1] : vector<32x32xf32> to vector<32xf32>
    %23 = vector.shape_cast %22 : vector<32xf32> to vector<32x1xf32>
    %24 = vector.broadcast %23 : vector<32x1xf32> to vector<32x32xf32>
    %25 = arith.subf %21, %24 : vector<32x32xf32>
    %26 = math.exp %25 : vector<32x32xf32>
    %cst_18 = arith.constant dense<0.000000e+00> : vector<32xf32>
    %27 = vector.multi_reduction <add>, %26, %cst_18 [1] : vector<32x32xf32> to vector<32xf32>
    %28 = vector.shape_cast %27 : vector<32xf32> to vector<32x1xf32>
    %29 = tpu.reciprocal %28 {approx = true} : vector<32x1xf32> -> vector<32x1xf32>
    %30 = vector.broadcast %29 : vector<32x1xf32> to vector<32x32xf32>
    %31 = arith.mulf %26, %30 : vector<32x32xf32>
    %32 = vector.extract_strided_slice %2 {offsets = [0, 0], sizes = [32, 16], strides = [1, 1]} : vector<32x128xf32> to vector<32x16xf32>
    %cst_19 = arith.constant dense<0.000000e+00> : vector<32x16xf32>
    %33 = tpu.matmul %31, %32, %cst_19 {dimension_numbers = #tpu.dot_dimension_numbers<[1], [0], [0], [1], [0, 0, 1, 1], [], []>} : vector<32x32xf32>, vector<32x16xf32>, vector<32x16xf32> -> vector<32x16xf32>
    %34 = vector.extract_strided_slice %8 {offsets = [0, 1], sizes = [32, 1], strides = [1, 1]} : vector<32x8xf32> to vector<32x1xf32>
    %35 = vector.extract_strided_slice %5 {offsets = [0, 1], sizes = [32, 1], strides = [1, 1]} : vector<32x8xf32> to vector<32x1xf32>
    %36 = tpu.transpose %35, [1, 0] : vector<32x1xf32> -> vector<1x32xf32>
    %37 = vector.broadcast %34 : vector<32x1xf32> to vector<32x32xf32>
    %38 = vector.broadcast %36 : vector<1x32xf32> to vector<32x32xf32>
    %39 = arith.addf %37, %38 : vector<32x32xf32>
    %cst_20 = arith.constant 0.000000e+00 : f32
    %40 = vector.broadcast %cst_20 : f32 to vector<32x32xf32>
    %41 = arith.cmpf ogt, %39, %40 : vector<32x32xf32>
    %cst_21 = arith.constant 2.000000e-01 : f32
    %42 = vector.broadcast %cst_21 : f32 to vector<32x32xf32>
    %43 = arith.mulf %42, %39 : vector<32x32xf32>
    %44 = arith.select %41, %39, %43 : vector<32x32xi1>, vector<32x32xf32>
    %45 = arith.addf %44, %9 : vector<32x32xf32>
    %cst_22 = arith.constant dense<0xFF800000> : vector<32xf32>
    %46 = vector.multi_reduction <maximumf>, %45, %cst_22 [1] : vector<32x32xf32> to vector<32xf32>
    %47 = vector.shape_cast %46 : vector<32xf32> to vector<32x1xf32>
    %48 = vector.broadcast %47 : vector<32x1xf32> to vector<32x32xf32>
    %49 = arith.subf %45, %48 : vector<32x32xf32>
    %50 = math.exp %49 : vector<32x32xf32>
    %cst_23 = arith.constant dense<0.000000e+00> : vector<32xf32>
    %51 = vector.multi_reduction <add>, %50, %cst_23 [1] : vector<32x32xf32> to vector<32xf32>
    %52 = vector.shape_cast %51 : vector<32xf32> to vector<32x1xf32>
    %53 = tpu.reciprocal %52 {approx = true} : vector<32x1xf32> -> vector<32x1xf32>
    %54 = vector.broadcast %53 : vector<32x1xf32> to vector<32x32xf32>
    %55 = arith.mulf %50, %54 : vector<32x32xf32>
    %56 = vector.extract_strided_slice %2 {offsets = [0, 16], sizes = [32, 16], strides = [1, 1]} : vector<32x128xf32> to vector<32x16xf32>
    %cst_24 = arith.constant dense<0.000000e+00> : vector<32x16xf32>
    %57 = tpu.matmul %55, %56, %cst_24 {dimension_numbers = #tpu.dot_dimension_numbers<[1], [0], [0], [1], [0, 0, 1, 1], [], []>} : vector<32x32xf32>, vector<32x16xf32>, vector<32x16xf32> -> vector<32x16xf32>
    %58 = vector.extract_strided_slice %8 {offsets = [0, 2], sizes = [32, 1], strides = [1, 1]} : vector<32x8xf32> to vector<32x1xf32>
    %59 = vector.extract_strided_slice %5 {offsets = [0, 2], sizes = [32, 1], strides = [1, 1]} : vector<32x8xf32> to vector<32x1xf32>
    %60 = tpu.transpose %59, [1, 0] : vector<32x1xf32> -> vector<1x32xf32>
    %61 = vector.broadcast %58 : vector<32x1xf32> to vector<32x32xf32>
    %62 = vector.broadcast %60 : vector<1x32xf32> to vector<32x32xf32>
    %63 = arith.addf %61, %62 : vector<32x32xf32>
    %cst_25 = arith.constant 0.000000e+00 : f32
    %64 = vector.broadcast %cst_25 : f32 to vector<32x32xf32>
    %65 = arith.cmpf ogt, %63, %64 : vector<32x32xf32>
    %cst_26 = arith.constant 2.000000e-01 : f32
    %66 = vector.broadcast %cst_26 : f32 to vector<32x32xf32>
    %67 = arith.mulf %66, %63 : vector<32x32xf32>
    %68 = arith.select %65, %63, %67 : vector<32x32xi1>, vector<32x32xf32>
    %69 = arith.addf %68, %9 : vector<32x32xf32>
    %cst_27 = arith.constant dense<0xFF800000> : vector<32xf32>
    %70 = vector.multi_reduction <maximumf>, %69, %cst_27 [1] : vector<32x32xf32> to vector<32xf32>
    %71 = vector.shape_cast %70 : vector<32xf32> to vector<32x1xf32>
    %72 = vector.broadcast %71 : vector<32x1xf32> to vector<32x32xf32>
    %73 = arith.subf %69, %72 : vector<32x32xf32>
    %74 = math.exp %73 : vector<32x32xf32>
    %cst_28 = arith.constant dense<0.000000e+00> : vector<32xf32>
    %75 = vector.multi_reduction <add>, %74, %cst_28 [1] : vector<32x32xf32> to vector<32xf32>
    %76 = vector.shape_cast %75 : vector<32xf32> to vector<32x1xf32>
    %77 = tpu.reciprocal %76 {approx = true} : vector<32x1xf32> -> vector<32x1xf32>
    %78 = vector.broadcast %77 : vector<32x1xf32> to vector<32x32xf32>
    %79 = arith.mulf %74, %78 : vector<32x32xf32>
    %80 = vector.extract_strided_slice %2 {offsets = [0, 32], sizes = [32, 16], strides = [1, 1]} : vector<32x128xf32> to vector<32x16xf32>
    %cst_29 = arith.constant dense<0.000000e+00> : vector<32x16xf32>
    %81 = tpu.matmul %79, %80, %cst_29 {dimension_numbers = #tpu.dot_dimension_numbers<[1], [0], [0], [1], [0, 0, 1, 1], [], []>} : vector<32x32xf32>, vector<32x16xf32>, vector<32x16xf32> -> vector<32x16xf32>
    %82 = vector.extract_strided_slice %8 {offsets = [0, 3], sizes = [32, 1], strides = [1, 1]} : vector<32x8xf32> to vector<32x1xf32>
    %83 = vector.extract_strided_slice %5 {offsets = [0, 3], sizes = [32, 1], strides = [1, 1]} : vector<32x8xf32> to vector<32x1xf32>
    %84 = tpu.transpose %83, [1, 0] : vector<32x1xf32> -> vector<1x32xf32>
    %85 = vector.broadcast %82 : vector<32x1xf32> to vector<32x32xf32>
    %86 = vector.broadcast %84 : vector<1x32xf32> to vector<32x32xf32>
    %87 = arith.addf %85, %86 : vector<32x32xf32>
    %cst_30 = arith.constant 0.000000e+00 : f32
    %88 = vector.broadcast %cst_30 : f32 to vector<32x32xf32>
    %89 = arith.cmpf ogt, %87, %88 : vector<32x32xf32>
    %cst_31 = arith.constant 2.000000e-01 : f32
    %90 = vector.broadcast %cst_31 : f32 to vector<32x32xf32>
    %91 = arith.mulf %90, %87 : vector<32x32xf32>
    %92 = arith.select %89, %87, %91 : vector<32x32xi1>, vector<32x32xf32>
    %93 = arith.addf %92, %9 : vector<32x32xf32>
    %cst_32 = arith.constant dense<0xFF800000> : vector<32xf32>
    %94 = vector.multi_reduction <maximumf>, %93, %cst_32 [1] : vector<32x32xf32> to vector<32xf32>
    %95 = vector.shape_cast %94 : vector<32xf32> to vector<32x1xf32>
    %96 = vector.broadcast %95 : vector<32x1xf32> to vector<32x32xf32>
    %97 = arith.subf %93, %96 : vector<32x32xf32>
    %98 = math.exp %97 : vector<32x32xf32>
    %cst_33 = arith.constant dense<0.000000e+00> : vector<32xf32>
    %99 = vector.multi_reduction <add>, %98, %cst_33 [1] : vector<32x32xf32> to vector<32xf32>
    %100 = vector.shape_cast %99 : vector<32xf32> to vector<32x1xf32>
    %101 = tpu.reciprocal %100 {approx = true} : vector<32x1xf32> -> vector<32x1xf32>
    %102 = vector.broadcast %101 : vector<32x1xf32> to vector<32x32xf32>
    %103 = arith.mulf %98, %102 : vector<32x32xf32>
    %104 = vector.extract_strided_slice %2 {offsets = [0, 48], sizes = [32, 16], strides = [1, 1]} : vector<32x128xf32> to vector<32x16xf32>
    %cst_34 = arith.constant dense<0.000000e+00> : vector<32x16xf32>
    %105 = tpu.matmul %103, %104, %cst_34 {dimension_numbers = #tpu.dot_dimension_numbers<[1], [0], [0], [1], [0, 0, 1, 1], [], []>} : vector<32x32xf32>, vector<32x16xf32>, vector<32x16xf32> -> vector<32x16xf32>
    %106 = vector.extract_strided_slice %8 {offsets = [0, 4], sizes = [32, 1], strides = [1, 1]} : vector<32x8xf32> to vector<32x1xf32>
    %107 = vector.extract_strided_slice %5 {offsets = [0, 4], sizes = [32, 1], strides = [1, 1]} : vector<32x8xf32> to vector<32x1xf32>
    %108 = tpu.transpose %107, [1, 0] : vector<32x1xf32> -> vector<1x32xf32>
    %109 = vector.broadcast %106 : vector<32x1xf32> to vector<32x32xf32>
    %110 = vector.broadcast %108 : vector<1x32xf32> to vector<32x32xf32>
    %111 = arith.addf %109, %110 : vector<32x32xf32>
    %cst_35 = arith.constant 0.000000e+00 : f32
    %112 = vector.broadcast %cst_35 : f32 to vector<32x32xf32>
    %113 = arith.cmpf ogt, %111, %112 : vector<32x32xf32>
    %cst_36 = arith.constant 2.000000e-01 : f32
    %114 = vector.broadcast %cst_36 : f32 to vector<32x32xf32>
    %115 = arith.mulf %114, %111 : vector<32x32xf32>
    %116 = arith.select %113, %111, %115 : vector<32x32xi1>, vector<32x32xf32>
    %117 = arith.addf %116, %9 : vector<32x32xf32>
    %cst_37 = arith.constant dense<0xFF800000> : vector<32xf32>
    %118 = vector.multi_reduction <maximumf>, %117, %cst_37 [1] : vector<32x32xf32> to vector<32xf32>
    %119 = vector.shape_cast %118 : vector<32xf32> to vector<32x1xf32>
    %120 = vector.broadcast %119 : vector<32x1xf32> to vector<32x32xf32>
    %121 = arith.subf %117, %120 : vector<32x32xf32>
    %122 = math.exp %121 : vector<32x32xf32>
    %cst_38 = arith.constant dense<0.000000e+00> : vector<32xf32>
    %123 = vector.multi_reduction <add>, %122, %cst_38 [1] : vector<32x32xf32> to vector<32xf32>
    %124 = vector.shape_cast %123 : vector<32xf32> to vector<32x1xf32>
    %125 = tpu.reciprocal %124 {approx = true} : vector<32x1xf32> -> vector<32x1xf32>
    %126 = vector.broadcast %125 : vector<32x1xf32> to vector<32x32xf32>
    %127 = arith.mulf %122, %126 : vector<32x32xf32>
    %128 = vector.extract_strided_slice %2 {offsets = [0, 64], sizes = [32, 16], strides = [1, 1]} : vector<32x128xf32> to vector<32x16xf32>
    %cst_39 = arith.constant dense<0.000000e+00> : vector<32x16xf32>
    %129 = tpu.matmul %127, %128, %cst_39 {dimension_numbers = #tpu.dot_dimension_numbers<[1], [0], [0], [1], [0, 0, 1, 1], [], []>} : vector<32x32xf32>, vector<32x16xf32>, vector<32x16xf32> -> vector<32x16xf32>
    %130 = vector.extract_strided_slice %8 {offsets = [0, 5], sizes = [32, 1], strides = [1, 1]} : vector<32x8xf32> to vector<32x1xf32>
    %131 = vector.extract_strided_slice %5 {offsets = [0, 5], sizes = [32, 1], strides = [1, 1]} : vector<32x8xf32> to vector<32x1xf32>
    %132 = tpu.transpose %131, [1, 0] : vector<32x1xf32> -> vector<1x32xf32>
    %133 = vector.broadcast %130 : vector<32x1xf32> to vector<32x32xf32>
    %134 = vector.broadcast %132 : vector<1x32xf32> to vector<32x32xf32>
    %135 = arith.addf %133, %134 : vector<32x32xf32>
    %cst_40 = arith.constant 0.000000e+00 : f32
    %136 = vector.broadcast %cst_40 : f32 to vector<32x32xf32>
    %137 = arith.cmpf ogt, %135, %136 : vector<32x32xf32>
    %cst_41 = arith.constant 2.000000e-01 : f32
    %138 = vector.broadcast %cst_41 : f32 to vector<32x32xf32>
    %139 = arith.mulf %138, %135 : vector<32x32xf32>
    %140 = arith.select %137, %135, %139 : vector<32x32xi1>, vector<32x32xf32>
    %141 = arith.addf %140, %9 : vector<32x32xf32>
    %cst_42 = arith.constant dense<0xFF800000> : vector<32xf32>
    %142 = vector.multi_reduction <maximumf>, %141, %cst_42 [1] : vector<32x32xf32> to vector<32xf32>
    %143 = vector.shape_cast %142 : vector<32xf32> to vector<32x1xf32>
    %144 = vector.broadcast %143 : vector<32x1xf32> to vector<32x32xf32>
    %145 = arith.subf %141, %144 : vector<32x32xf32>
    %146 = math.exp %145 : vector<32x32xf32>
    %cst_43 = arith.constant dense<0.000000e+00> : vector<32xf32>
    %147 = vector.multi_reduction <add>, %146, %cst_43 [1] : vector<32x32xf32> to vector<32xf32>
    %148 = vector.shape_cast %147 : vector<32xf32> to vector<32x1xf32>
    %149 = tpu.reciprocal %148 {approx = true} : vector<32x1xf32> -> vector<32x1xf32>
    %150 = vector.broadcast %149 : vector<32x1xf32> to vector<32x32xf32>
    %151 = arith.mulf %146, %150 : vector<32x32xf32>
    %152 = vector.extract_strided_slice %2 {offsets = [0, 80], sizes = [32, 16], strides = [1, 1]} : vector<32x128xf32> to vector<32x16xf32>
    %cst_44 = arith.constant dense<0.000000e+00> : vector<32x16xf32>
    %153 = tpu.matmul %151, %152, %cst_44 {dimension_numbers = #tpu.dot_dimension_numbers<[1], [0], [0], [1], [0, 0, 1, 1], [], []>} : vector<32x32xf32>, vector<32x16xf32>, vector<32x16xf32> -> vector<32x16xf32>
    %154 = vector.extract_strided_slice %8 {offsets = [0, 6], sizes = [32, 1], strides = [1, 1]} : vector<32x8xf32> to vector<32x1xf32>
    %155 = vector.extract_strided_slice %5 {offsets = [0, 6], sizes = [32, 1], strides = [1, 1]} : vector<32x8xf32> to vector<32x1xf32>
    %156 = tpu.transpose %155, [1, 0] : vector<32x1xf32> -> vector<1x32xf32>
    %157 = vector.broadcast %154 : vector<32x1xf32> to vector<32x32xf32>
    %158 = vector.broadcast %156 : vector<1x32xf32> to vector<32x32xf32>
    %159 = arith.addf %157, %158 : vector<32x32xf32>
    %cst_45 = arith.constant 0.000000e+00 : f32
    %160 = vector.broadcast %cst_45 : f32 to vector<32x32xf32>
    %161 = arith.cmpf ogt, %159, %160 : vector<32x32xf32>
    %cst_46 = arith.constant 2.000000e-01 : f32
    %162 = vector.broadcast %cst_46 : f32 to vector<32x32xf32>
    %163 = arith.mulf %162, %159 : vector<32x32xf32>
    %164 = arith.select %161, %159, %163 : vector<32x32xi1>, vector<32x32xf32>
    %165 = arith.addf %164, %9 : vector<32x32xf32>
    %cst_47 = arith.constant dense<0xFF800000> : vector<32xf32>
    %166 = vector.multi_reduction <maximumf>, %165, %cst_47 [1] : vector<32x32xf32> to vector<32xf32>
    %167 = vector.shape_cast %166 : vector<32xf32> to vector<32x1xf32>
    %168 = vector.broadcast %167 : vector<32x1xf32> to vector<32x32xf32>
    %169 = arith.subf %165, %168 : vector<32x32xf32>
    %170 = math.exp %169 : vector<32x32xf32>
    %cst_48 = arith.constant dense<0.000000e+00> : vector<32xf32>
    %171 = vector.multi_reduction <add>, %170, %cst_48 [1] : vector<32x32xf32> to vector<32xf32>
    %172 = vector.shape_cast %171 : vector<32xf32> to vector<32x1xf32>
    %173 = tpu.reciprocal %172 {approx = true} : vector<32x1xf32> -> vector<32x1xf32>
    %174 = vector.broadcast %173 : vector<32x1xf32> to vector<32x32xf32>
    %175 = arith.mulf %170, %174 : vector<32x32xf32>
    %176 = vector.extract_strided_slice %2 {offsets = [0, 96], sizes = [32, 16], strides = [1, 1]} : vector<32x128xf32> to vector<32x16xf32>
    %cst_49 = arith.constant dense<0.000000e+00> : vector<32x16xf32>
    %177 = tpu.matmul %175, %176, %cst_49 {dimension_numbers = #tpu.dot_dimension_numbers<[1], [0], [0], [1], [0, 0, 1, 1], [], []>} : vector<32x32xf32>, vector<32x16xf32>, vector<32x16xf32> -> vector<32x16xf32>
    %178 = vector.extract_strided_slice %8 {offsets = [0, 7], sizes = [32, 1], strides = [1, 1]} : vector<32x8xf32> to vector<32x1xf32>
    %179 = vector.extract_strided_slice %5 {offsets = [0, 7], sizes = [32, 1], strides = [1, 1]} : vector<32x8xf32> to vector<32x1xf32>
    %180 = tpu.transpose %179, [1, 0] : vector<32x1xf32> -> vector<1x32xf32>
    %181 = vector.broadcast %178 : vector<32x1xf32> to vector<32x32xf32>
    %182 = vector.broadcast %180 : vector<1x32xf32> to vector<32x32xf32>
    %183 = arith.addf %181, %182 : vector<32x32xf32>
    %cst_50 = arith.constant 0.000000e+00 : f32
    %184 = vector.broadcast %cst_50 : f32 to vector<32x32xf32>
    %185 = arith.cmpf ogt, %183, %184 : vector<32x32xf32>
    %cst_51 = arith.constant 2.000000e-01 : f32
    %186 = vector.broadcast %cst_51 : f32 to vector<32x32xf32>
    %187 = arith.mulf %186, %183 : vector<32x32xf32>
    %188 = arith.select %185, %183, %187 : vector<32x32xi1>, vector<32x32xf32>
    %189 = arith.addf %188, %9 : vector<32x32xf32>
    %cst_52 = arith.constant dense<0xFF800000> : vector<32xf32>
    %190 = vector.multi_reduction <maximumf>, %189, %cst_52 [1] : vector<32x32xf32> to vector<32xf32>
    %191 = vector.shape_cast %190 : vector<32xf32> to vector<32x1xf32>
    %192 = vector.broadcast %191 : vector<32x1xf32> to vector<32x32xf32>
    %193 = arith.subf %189, %192 : vector<32x32xf32>
    %194 = math.exp %193 : vector<32x32xf32>
    %cst_53 = arith.constant dense<0.000000e+00> : vector<32xf32>
    %195 = vector.multi_reduction <add>, %194, %cst_53 [1] : vector<32x32xf32> to vector<32xf32>
    %196 = vector.shape_cast %195 : vector<32xf32> to vector<32x1xf32>
    %197 = tpu.reciprocal %196 {approx = true} : vector<32x1xf32> -> vector<32x1xf32>
    %198 = vector.broadcast %197 : vector<32x1xf32> to vector<32x32xf32>
    %199 = arith.mulf %194, %198 : vector<32x32xf32>
    %200 = vector.extract_strided_slice %2 {offsets = [0, 112], sizes = [32, 16], strides = [1, 1]} : vector<32x128xf32> to vector<32x16xf32>
    %cst_54 = arith.constant dense<0.000000e+00> : vector<32x16xf32>
    %201 = tpu.matmul %199, %200, %cst_54 {dimension_numbers = #tpu.dot_dimension_numbers<[1], [0], [0], [1], [0, 0, 1, 1], [], []>} : vector<32x32xf32>, vector<32x16xf32>, vector<32x16xf32> -> vector<32x16xf32>
    %202 = tpu.concatenate %33, %57, %81, %105, %129, %153, %177, %201 in 1 : vector<32x16xf32>, vector<32x16xf32>, vector<32x16xf32>, vector<32x16xf32>, vector<32x16xf32>, vector<32x16xf32>, vector<32x16xf32>, vector<32x16xf32> -> vector<32x128xf32>
    %c0_55 = arith.constant 0 : index
    %c0_56 = arith.constant 0 : index
    %203 = vector.load %arg6[%c0_55, %c0_56] : memref<1x128xf32, #tpu.memory_space<vmem>>, vector<1x128xf32>
    %204 = vector.broadcast %203 : vector<1x128xf32> to vector<32x128xf32>
    %205 = arith.addf %202, %204 : vector<32x128xf32>
    %cst_57 = arith.constant 0.000000e+00 : f32
    %206 = vector.broadcast %cst_57 : f32 to vector<32x128xf32>
    %207 = arith.maximumf %205, %206 : vector<32x128xf32>
    %c0_58 = arith.constant 0 : index
    %c0_59 = arith.constant 0 : index
    %208 = vector.load %arg8[%c0_58, %c0_59] : memref<32x128xf32, #tpu.memory_space<vmem>>, vector<32x128xf32>
    tpu.vector_store %arg8[%c0_58, %c0_59], %207 {strides = array<i32>} : memref<32x128xf32, #tpu.memory_space<vmem>>, vector<32x128xf32>,
    return
  }
  func.func @transform_0(%arg0: i32) -> (i32, i32) {
    %c0_i32 = arith.constant 0 : i32
    %c0_i32_0 = arith.constant 0 : i32
    return %arg0, %c0_i32 : i32, i32
  }
  func.func @transform_1(%arg0: i32) -> (i32, i32) {
    %c0_i32 = arith.constant 0 : i32
    %c0_i32_0 = arith.constant 0 : i32
    %c0_i32_1 = arith.constant 0 : i32
    return %c0_i32, %c0_i32_0 : i32, i32
  }
  func.func @transform_2(%arg0: i32) -> (i32, i32) {
    %c0_i32 = arith.constant 0 : i32
    %c0_i32_0 = arith.constant 0 : i32
    %c0_i32_1 = arith.constant 0 : i32
    return %c0_i32, %c0_i32_0 : i32, i32
  }
  func.func @transform_3(%arg0: i32) -> (i32, i32) {
    %c0_i32 = arith.constant 0 : i32
    %c0_i32_0 = arith.constant 0 : i32
    %c0_i32_1 = arith.constant 0 : i32
    return %c0_i32, %c0_i32_0 : i32, i32
  }
  func.func @transform_4(%arg0: i32) -> (i32, i32) {
    %c0_i32 = arith.constant 0 : i32
    %c0_i32_0 = arith.constant 0 : i32
    %c0_i32_1 = arith.constant 0 : i32
    return %c0_i32, %c0_i32_0 : i32, i32
  }
  func.func @transform_5(%arg0: i32) -> (i32, i32) {
    %c0_i32 = arith.constant 0 : i32
    %c0_i32_0 = arith.constant 0 : i32
    %c0_i32_1 = arith.constant 0 : i32
    return %c0_i32, %c0_i32_0 : i32, i32
  }
  func.func @transform_6(%arg0: i32) -> (i32, i32) {
    %c0_i32 = arith.constant 0 : i32
    %c0_i32_0 = arith.constant 0 : i32
    return %arg0, %c0_i32 : i32, i32
  }
  func.func @transform_7(%arg0: i32) -> (i32, i32) {
    %c0_i32 = arith.constant 0 : i32
    %c0_i32_0 = arith.constant 0 : i32
    return %arg0, %c0_i32 : i32, i32
  }
}

</mosaic_0001>

<llo_original>
// kernel: tpu_custom_call.1
$region0: #{tpu_custom_call.1}
  #allocation0 [shape = 'u32[]', space=smem, size = 0x4, offset = 0x4, fixed_abs, tag = 'smem constant byte address 0x4 - core index']
  #allocation1 [shape = 'u32[72,128]{1,0:T(1,128)}', space=vmem, size = 0x9000, scoped, tag = 'internal scratch']
  %s0 = inlined_call_operand.vmem [shape: f32[32,16], index: 0, kind: input, shape index: {}]
  %s1 = inlined_call_operand.vmem [shape: f32[32,16], index: 1, kind: input, shape index: {}]
  %s2 = inlined_call_operand.vmem [shape: f32[16,128], index: 2, kind: input, shape index: {}]
  %s3 = inlined_call_operand.vmem [shape: f32[16,8], index: 3, kind: input, shape index: {}]
  %s4 = inlined_call_operand.vmem [shape: f32[16,8], index: 4, kind: input, shape index: {}]
  %s5 = inlined_call_operand.vmem [shape: f32[1,128], index: 5, kind: input, shape index: {}]
  %s6 = inlined_call_operand.vmem [shape: f32[32,32], index: 6, kind: input, shape index: {}]
  %s7 = inlined_call_operand.hbm [shape: f32[32,128], index: 7, kind: output, shape index: {}]
  %s8 = sld [smem:[#allocation0]]
  $region38: #{tpu_custom_call.1} parent=0
    _
  %s10 = ssub.s32 1, %s8
  %s11 = scalar_select 0, %s10, %s8
  $region1: #{tpu_custom_call.1} parent=0
    #allocation2 [shape = 'u8[16384]{0}', space=vmem, size = 0x4000, scoped, tag = 'output window, operand 0, single buffered']
    #allocation3 [shape = 's32[1]{0}', space=sflag, size = 0x4, scoped, tag = 'scoped memory for tpu_custom_call.1']
    %12 = vsyncpa [#allocation3], 0
    // Predicated region
    $region2: #{tpu_custom_call.1} parent=1 // pred_check
      _
    $region3: #{tpu_custom_call.1} parent=1 // pred_check_branch
      %14 = sbr.rel (0) target = $region5
    $region4: #{tpu_custom_call.1} parent=1 // pred_region
      _
    $region5: #{tpu_custom_call.1} parent=1 // pred_fallthru
      _
    // Predicated region
    $region6: #{tpu_custom_call.1} parent=1 // pred_check
      _
    $region7: #{tpu_custom_call.1} parent=1 // pred_check_branch
      %16 = sbr.rel (0) target = $region9
    $region8: #{tpu_custom_call.1} parent=1 // pred_region
      _
    $region9: #{tpu_custom_call.1} parent=1 // pred_fallthru
      _
    // Predicated region
    $region10: #{tpu_custom_call.1} parent=1 // pred_check
      _
    $region11: #{tpu_custom_call.1} parent=1 // pred_check_branch
      %18 = sbr.rel (0) target = $region13
    $region12: #{tpu_custom_call.1} parent=1 // pred_region
      _
    $region13: #{tpu_custom_call.1} parent=1 // pred_fallthru
      _
    // Predicated region
    $region14: #{tpu_custom_call.1} parent=1 // pred_check
      _
    $region15: #{tpu_custom_call.1} parent=1 // pred_check_branch
      %20 = sbr.rel (0) target = $region17
    $region16: #{tpu_custom_call.1} parent=1 // pred_region
      _
    $region17: #{tpu_custom_call.1} parent=1 // pred_fallthru
      _
    // Predicated region
    $region18: #{tpu_custom_call.1} parent=1 // pred_check
      _
    $region19: #{tpu_custom_call.1} parent=1 // pred_check_branch
      %22 = sbr.rel (0) target = $region21
    $region20: #{tpu_custom_call.1} parent=1 // pred_region
      _
    $region21: #{tpu_custom_call.1} parent=1 // pred_fallthru
      _
    // Predicated region
    $region22: #{tpu_custom_call.1} parent=1 // pred_check
      _
    $region23: #{tpu_custom_call.1} parent=1 // pred_check_branch
      %24 = sbr.rel (0) target = $region25
    $region24: #{tpu_custom_call.1} parent=1 // pred_region
      _
    $region25: #{tpu_custom_call.1} parent=1 // pred_fallthru
      _
    // Predicated region
    $region26: #{tpu_custom_call.1} parent=1 // pred_check
      _
    $region27: #{tpu_custom_call.1} parent=1 // pred_check_branch
      %26 = sbr.rel (0) target = $region29
    $region28: #{tpu_custom_call.1} parent=1 // pred_region
      _
    $region29: #{tpu_custom_call.1} parent=1 // pred_fallthru
      _
    %v27 = vld [vmem:[%s1] sm:$0xff]
    %v28 = vld [vmem:[%s1 + $0x8] sm:$0xff]
    %v29 = vld [vmem:[%s1 + $0x10] sm:$0xff]
    %v30 = vld [vmem:[%s1 + $0x18] sm:$0xff]
    %v31 = vld [vmem:[%s2] sm:$0xff]
    %v32 = vld [vmem:[%s2 + $0x8] sm:$0xff]
    %vm33 = vcmask 130048
    %v35 = vsel %vm33, %v27, 0
    %v38 = vsel %vm33, %v28, 0
    %v41 = vsel %vm33, %v29, 0
    %v44 = vsel %vm33, %v30, 0
    %46 = vmatpush.msra.mxu0 0.0
    %47 = vmatpush.msra.mxu0 0.0
    %48 = vmatpush.msra.mxu0 0.0
    %49 = vmatpush.msra.mxu0 0.0
    %50 = vmatpush.msra.mxu0 0.0
    %51 = vmatpush.msra.mxu0 0.0
    %52 = vmatpush.msra.mxu0 0.0
    %53 = vmatpush.msra.mxu0 0.0
    %54 = vmatpush.msra.mxu0 0.0
    %55 = vmatpush.msra.mxu0 0.0
    %56 = vmatpush.msra.mxu0 0.0
    %57 = vmatpush.msra.mxu0 0.0
    %58 = vmatpush.msra.mxu0 0.0
    %59 = vmatpush.msra.mxu0 0.0
    %60 = vmatpush.msra.mxu0 %v32
    %61 = vmatpush.msra.mxu0 %v31
    %62 = vmatmul.f32.gmra.mxu0 %v35
    %v63 = vpop.f32.mrf.mxu0
    %v64 = vadd.f32 0.0, %v63
    %65 = vmatmul.f32.gmra.mxu0 %v38
    %v66 = vpop.f32.mrf.mxu0
    %v67 = vadd.f32 0.0, %v66
    %68 = vmatmul.f32.gmra.mxu0 %v41
    %v69 = vpop.f32.mrf.mxu0
    %v70 = vadd.f32 0.0, %v69
    %71 = vmatmul.f32.gmra.mxu0 %v44
    %v72 = vpop.f32.mrf.mxu0
    %v73 = vadd.f32 0.0, %v72
    %74 = vdwg.mxu0
    %v75 = vld [vmem:[%s3] sm:$0xff]
    %v76 = vld [vmem:[%s3 + $0x8] sm:$0xff]
    %77 = vmatpush.msra.mxu0 0.0
    %78 = vmatpush.msra.mxu0 0.0
    %79 = vmatpush.msra.mxu0 0.0
    %80 = vmatpush.msra.mxu0 0.0
    %81 = vmatpush.msra.mxu0 0.0
    %82 = vmatpush.msra.mxu0 0.0
    %83 = vmatpush.msra.mxu0 0.0
    %84 = vmatpush.msra.mxu0 0.0
    %85 = vmatpush.msra.mxu0 0.0
    %86 = vmatpush.msra.mxu0 0.0
    %87 = vmatpush.msra.mxu0 0.0
    %88 = vmatpush.msra.mxu0 0.0
    %89 = vmatpush.msra.mxu0 0.0
    %90 = vmatpush.msra.mxu0 0.0
    %91 = vmatpush.msra.mxu0 %v76
    %92 = vmatpush.msra.mxu0 %v75
    %93 = vmatmul.f32.gmra.mxu0 %v35
    %v94 = vpop.f32.mrf.mxu0
    %v95 = vadd.f32 0.0, %v94
    %96 = vmatmul.f32.gmra.mxu0 %v38
    %v97 = vpop.f32.mrf.mxu0
    %v98 = vadd.f32 0.0, %v97
    %99 = vmatmul.f32.gmra.mxu0 %v41
    %v100 = vpop.f32.mrf.mxu0
    %v101 = vadd.f32 0.0, %v100
    %102 = vmatmul.f32.gmra.mxu0 %v44
    %v103 = vpop.f32.mrf.mxu0
    %v104 = vadd.f32 0.0, %v103
    %105 = vdwg.mxu0
    %v106 = vld [vmem:[%s0] sm:$0xff]
    %v107 = vld [vmem:[%s0 + $0x8] sm:$0xff]
    %v108 = vld [vmem:[%s0 + $0x10] sm:$0xff]
    %v109 = vld [vmem:[%s0 + $0x18] sm:$0xff]
    %v110 = vld [vmem:[%s4] sm:$0xff]
    %v111 = vld [vmem:[%s4 + $0x8] sm:$0xff]
    %v113 = vsel %vm33, %v106, 0
    %v116 = vsel %vm33, %v107, 0
    %v119 = vsel %vm33, %v108, 0
    %v122 = vsel %vm33, %v109, 0
    %124 = vmatpush.msra.mxu0 0.0
    %125 = vmatpush.msra.mxu0 0.0
    %126 = vmatpush.msra.mxu0 0.0
    %127 = vmatpush.msra.mxu0 0.0
    %128 = vmatpush.msra.mxu0 0.0
    %129 = vmatpush.msra.mxu0 0.0
    %130 = vmatpush.msra.mxu0 0.0
    %131 = vmatpush.msra.mxu0 0.0
    %132 = vmatpush.msra.mxu0 0.0
    %133 = vmatpush.msra.mxu0 0.0
    %134 = vmatpush.msra.mxu0 0.0
    %135 = vmatpush.msra.mxu0 0.0
    %136 = vmatpush.msra.mxu0 0.0
    %137 = vmatpush.msra.mxu0 0.0
    %138 = vmatpush.msra.mxu0 %v111
    %139 = vmatpush.msra.mxu0 %v110
    %140 = vmatmul.f32.gmra.mxu0 %v113
    %v141 = vpop.f32.mrf.mxu0
    %v142 = vadd.f32 0.0, %v141
    %143 = vmatmul.f32.gmra.mxu0 %v116
    %v144 = vpop.f32.mrf.mxu0
    %v145 = vadd.f32 0.0, %v144
    %146 = vmatmul.f32.gmra.mxu0 %v119
    %v147 = vpop.f32.mrf.mxu0
    %v148 = vadd.f32 0.0, %v147
    %149 = vmatmul.f32.gmra.mxu0 %v122
    %v150 = vpop.f32.mrf.mxu0
    %v151 = vadd.f32 0.0, %v150
    %152 = vdwg.mxu0
    %v153 = vld [vmem:[%s6] sm:$0xff]
    %v154 = vld [vmem:[%s6 + $0x8] sm:$0xff]
    %v155 = vld [vmem:[%s6 + $0x10] sm:$0xff]
    %v156 = vld [vmem:[%s6 + $0x18] sm:$0xff]
    %157 = vxpose.xlu0.b32.start [1/16] %v95, 128
    %158 = vxpose.xlu0.b32.cont [2/16] %v98, 128
    %159 = vxpose.xlu0.b32.cont [3/16] %v101, 128
    %160 = vxpose.xlu0.b32.cont [4/16] %v104, 128
    %161 = vxpose.xlu0.b32.cont [5/16] 0.0, 128
    %162 = vxpose.xlu0.b32.cont [6/16] 0.0, 128
    %163 = vxpose.xlu0.b32.cont [7/16] 0.0, 128
    %164 = vxpose.xlu0.b32.cont [8/16] 0.0, 128
    %165 = vxpose.xlu0.b32.cont [9/16] 0.0, 128
    %166 = vxpose.xlu0.b32.cont [10/16] 0.0, 128
    %167 = vxpose.xlu0.b32.cont [11/16] 0.0, 128
    %168 = vxpose.xlu0.b32.cont [12/16] 0.0, 128
    %169 = vxpose.xlu0.b32.cont [13/16] 0.0, 128
    %170 = vxpose.xlu0.b32.cont [14/16] 0.0, 128
    %171 = vxpose.xlu0.b32.cont [15/16] 0.0, 128
    %172 = vxpose.xlu0.b32.end [16/16] 0.0, 128
    %v173 = vpop.trf.xlu0
    %v174 = vpop.trf.xlu0
    %v175 = vpop.trf.xlu0
    %v176 = vpop.trf.xlu0
    %v177 = vpop.trf.xlu0
    %v178 = vpop.trf.xlu0
    %v179 = vpop.trf.xlu0
    %v180 = vpop.trf.xlu0
    %v181 = vpop.trf.xlu0
    %v182 = vpop.trf.xlu0
    %v183 = vpop.trf.xlu0
    %v184 = vpop.trf.xlu0
    %v185 = vpop.trf.xlu0
    %v186 = vpop.trf.xlu0
    %v187 = vpop.trf.xlu0
    %v188 = vpop.trf.xlu0
    %190 = vset.pattern.permute.xlu0 0
    %191 = vperm.xlu0 %190, %v142
    %v192 = vpop.permute.xlu0 %191
    %195 = vset.pattern.permute.xlu0 0
    %196 = vperm.xlu0 %195, %v145
    %v197 = vpop.permute.xlu0 %196
    %200 = vset.pattern.permute.xlu0 0
    %201 = vperm.xlu0 %200, %v148
    %v202 = vpop.permute.xlu0 %201
    %205 = vset.pattern.permute.xlu0 0
    %206 = vperm.xlu0 %205, %v151
    %v207 = vpop.permute.xlu0 %206
    %v209 = vperm.slane %v173, 0
    %v210 = vadd.f32 %v192, %v209
    %v211 = vadd.f32 %v197, %v209
    %v212 = vadd.f32 %v202, %v209
    %v213 = vadd.f32 %v207, %v209
    %vm214 = vcmp.gt.f32.partialorder %v210, 0.0
    %vm215 = vcmp.gt.f32.partialorder %v211, 0.0
    %vm216 = vcmp.gt.f32.partialorder %v212, 0.0
    %vm217 = vcmp.gt.f32.partialorder %v213, 0.0
    %v218 = vmul.f32 %v210, 0.2
    %v219 = vmul.f32 %v211, 0.2
    %v220 = vmul.f32 %v212, 0.2
    %v221 = vmul.f32 %v213, 0.2
    %v222 = vsel %vm214, %v210, %v218
    %v223 = vsel %vm215, %v211, %v219
    %v224 = vsel %vm216, %v212, %v220
    %v225 = vsel %vm217, %v213, %v221
    %v226 = vadd.f32 %v222, %v153
    %v227 = vadd.f32 %v223, %v154
    %v228 = vadd.f32 %v224, %v155
    %v229 = vadd.f32 %v225, %v156
    %vm230 = vcmask 261120
    %v231 = vsel %vm230, %v226, -inf
    %232 = vmax.xlane.f32.xlu0 %v231
    %v233 = vpop.xlane.xlu0 %232
    %v234 = vsel %vm230, %v227, -inf
    %235 = vmax.xlane.f32.xlu0 %v234
    %v236 = vpop.xlane.xlu0 %235
    %v237 = vsel %vm230, %v228, -inf
    %238 = vmax.xlane.f32.xlu0 %v237
    %v239 = vpop.xlane.xlu0 %238
    %v240 = vsel %vm230, %v229, -inf
    %241 = vmax.xlane.f32.xlu0 %v240
    %v242 = vpop.xlane.xlu0 %241
    %v243 = vsub.f32 %v226, %v233
    %v244 = vsub.f32 %v227, %v236
    %v245 = vsub.f32 %v228, %v239
    %v246 = vsub.f32 %v229, %v242
    %v247 = vmul.f32 %v243, 1.442695
    %v248 = vpow.pop %v247
    %v249 = vmul.f32 %v244, 1.442695
    %v250 = vpow.pop %v249
    %v251 = vmul.f32 %v245, 1.442695
    %v252 = vpow.pop %v251
    %v253 = vmul.f32 %v246, 1.442695
    %v254 = vpow.pop %v253
    %v255 = vsel %vm230, %v248, 0.0
    %256 = vadd.xlane.f32.xlu0 %v255
    %v257 = vpop.xlane.xlu0 %256
    %v258 = vsel %vm230, %v250, 0.0
    %259 = vadd.xlane.f32.xlu0 %v258
    %v260 = vpop.xlane.xlu0 %259
    %v261 = vsel %vm230, %v252, 0.0
    %262 = vadd.xlane.f32.xlu0 %v261
    %v263 = vpop.xlane.xlu0 %262
    %v264 = vsel %vm230, %v254, 0.0
    %265 = vadd.xlane.f32.xlu0 %v264
    %v266 = vpop.xlane.xlu0 %265
    %v267 = vrcp.pop %v257
    %v268 = vrcp.pop %v260
    %v269 = vrcp.pop %v263
    %v270 = vrcp.pop %v266
    %v271 = vmul.f32 %v248, %v267
    %v272 = vmul.f32 %v250, %v268
    %v273 = vmul.f32 %v252, %v269
    %v274 = vmul.f32 %v254, %v270
    %v276 = vsel %vm230, %v271, 0
    %v279 = vsel %vm230, %v272, 0
    %v282 = vsel %vm230, %v273, 0
    %v285 = vsel %vm230, %v274, 0
    %287 = vmatpush.msra.mxu0 0.0
    %288 = vmatpush.msra.mxu0 0.0
    %289 = vmatpush.msra.mxu0 0.0
    %290 = vmatpush.msra.mxu0 0.0
    %291 = vmatpush.msra.mxu0 0.0
    %292 = vmatpush.msra.mxu0 0.0
    %293 = vmatpush.msra.mxu0 0.0
    %294 = vmatpush.msra.mxu0 0.0
    %295 = vmatpush.msra.mxu0 0.0
    %296 = vmatpush.msra.mxu0 0.0
    %297 = vmatpush.msra.mxu0 0.0
    %298 = vmatpush.msra.mxu0 0.0
    %299 = vmatpush.msra.mxu0 %v73
    %300 = vmatpush.msra.mxu0 %v70
    %301 = vmatpush.msra.mxu0 %v67
    %302 = vmatpush.msra.mxu0 %v64
    %303 = vmatmul.f32.gmra.mxu0 %v276
    %v304 = vpop.f32.mrf.mxu0
    %v305 = vadd.f32 0.0, %v304
    %306 = vmatmul.f32.gmra.mxu0 %v279
    %v307 = vpop.f32.mrf.mxu0
    %v308 = vadd.f32 0.0, %v307
    %309 = vmatmul.f32.gmra.mxu0 %v282
    %v310 = vpop.f32.mrf.mxu0
    %v311 = vadd.f32 0.0, %v310
    %312 = vmatmul.f32.gmra.mxu0 %v285
    %v313 = vpop.f32.mrf.mxu0
    %v314 = vadd.f32 0.0, %v313
    %315 = vdwg.mxu0
    %320 = vrot.lane.b32.xlu0 %v95, 127
    %v321 = vpop.permute.xlu0 %320
    %322 = vrot.lane.b32.xlu0 %v98, 127
    %v323 = vpop.permute.xlu0 %322
    %324 = vrot.lane.b32.xlu0 %v101, 127
    %v325 = vpop.permute.xlu0 %324
    %326 = vrot.lane.b32.xlu0 %v104, 127
    %v327 = vpop.permute.xlu0 %326
    %332 = vxpose.xlu0.b32.start [1/16] %v321, 128
    %333 = vxpose.xlu0.b32.cont [2/16] %v323, 128
    %334 = vxpose.xlu0.b32.cont [3/16] %v325, 128
    %335 = vxpose.xlu0.b32.cont [4/16] %v327, 128
    %336 = vxpose.xlu0.b32.cont [5/16] 0.0, 128
    %337 = vxpose.xlu0.b32.cont [6/16] 0.0, 128
    %338 = vxpose.xlu0.b32.cont [7/16] 0.0, 128
    %339 = vxpose.xlu0.b32.cont [8/16] 0.0, 128
    %340 = vxpose.xlu0.b32.cont [9/16] 0.0, 128
    %341 = vxpose.xlu0.b32.cont [10/16] 0.0, 128
    %342 = vxpose.xlu0.b32.cont [11/16] 0.0, 128
    %343 = vxpose.xlu0.b32.cont [12/16] 0.0, 128
    %344 = vxpose.xlu0.b32.cont [13/16] 0.0, 128
    %345 = vxpose.xlu0.b32.cont [14/16] 0.0, 128
    %346 = vxpose.xlu0.b32.cont [15/16] 0.0, 128
    %347 = vxpose.xlu0.b32.end [16/16] 0.0, 128
    %v348 = vpop.trf.xlu0
    %v349 = vpop.trf.xlu0
    %v350 = vpop.trf.xlu0
    %v351 = vpop.trf.xlu0
    %v352 = vpop.trf.xlu0
    %v353 = vpop.trf.xlu0
    %v354 = vpop.trf.xlu0
    %v355 = vpop.trf.xlu0
    %v356 = vpop.trf.xlu0
    %v357 = vpop.trf.xlu0
    %v358 = vpop.trf.xlu0
    %v359 = vpop.trf.xlu0
    %v360 = vpop.trf.xlu0
    %v361 = vpop.trf.xlu0
    %v362 = vpop.trf.xlu0
    %v363 = vpop.trf.xlu0
    %364 = vset.pattern.permute.xlu0 1
    %365 = vperm.xlu0 %364, %v142
    %v366 = vpop.permute.xlu0 %365
    %368 = vset.pattern.permute.xlu0 1
    %369 = vperm.xlu0 %368, %v145
    %v370 = vpop.permute.xlu0 %369
    %372 = vset.pattern.permute.xlu0 1
    %373 = vperm.xlu0 %372, %v148
    %v374 = vpop.permute.xlu0 %373
    %376 = vset.pattern.permute.xlu0 1
    %377 = vperm.xlu0 %376, %v151
    %v378 = vpop.permute.xlu0 %377
    %v380 = vperm.slane %v348, 0
    %v381 = vadd.f32 %v366, %v380
    %v382 = vadd.f32 %v370, %v380
    %v383 = vadd.f32 %v374, %v380
    %v384 = vadd.f32 %v378, %v380
    %vm385 = vcmp.gt.f32.partialorder %v381, 0.0
    %vm386 = vcmp.gt.f32.partialorder %v382, 0.0
    %vm387 = vcmp.gt.f32.partialorder %v383, 0.0
    %vm388 = vcmp.gt.f32.partialorder %v384, 0.0
    %v389 = vmul.f32 %v381, 0.2
    %v390 = vmul.f32 %v382, 0.2
    %v391 = vmul.f32 %v383, 0.2
    %v392 = vmul.f32 %v384, 0.2
    %v393 = vsel %vm385, %v381, %v389
    %v394 = vsel %vm386, %v382, %v390
    %v395 = vsel %vm387, %v383, %v391
    %v396 = vsel %vm388, %v384, %v392
    %v397 = vadd.f32 %v393, %v153
    %v398 = vadd.f32 %v394, %v154
    %v399 = vadd.f32 %v395, %v155
    %v400 = vadd.f32 %v396, %v156
    %v401 = vsel %vm230, %v397, -inf
    %402 = vmax.xlane.f32.xlu0 %v401
    %v403 = vpop.xlane.xlu0 %402
    %v404 = vsel %vm230, %v398, -inf
    %405 = vmax.xlane.f32.xlu0 %v404
    %v406 = vpop.xlane.xlu0 %405
    %v407 = vsel %vm230, %v399, -inf
    %408 = vmax.xlane.f32.xlu0 %v407
    %v409 = vpop.xlane.xlu0 %408
    %v410 = vsel %vm230, %v400, -inf
    %411 = vmax.xlane.f32.xlu0 %v410
    %v412 = vpop.xlane.xlu0 %411
    %v413 = vsub.f32 %v397, %v403
    %v414 = vsub.f32 %v398, %v406
    %v415 = vsub.f32 %v399, %v409
    %v416 = vsub.f32 %v400, %v412
    %v417 = vmul.f32 %v413, 1.442695
    %v418 = vpow.pop %v417
    %v419 = vmul.f32 %v414, 1.442695
    %v420 = vpow.pop %v419
    %v421 = vmul.f32 %v415, 1.442695
    %v422 = vpow.pop %v421
    %v423 = vmul.f32 %v416, 1.442695
    %v424 = vpow.pop %v423
    %v425 = vsel %vm230, %v418, 0.0
    %426 = vadd.xlane.f32.xlu0 %v425
    %v427 = vpop.xlane.xlu0 %426
    %v428 = vsel %vm230, %v420, 0.0
    %429 = vadd.xlane.f32.xlu0 %v428
    %v430 = vpop.xlane.xlu0 %429
    %v431 = vsel %vm230, %v422, 0.0
    %432 = vadd.xlane.f32.xlu0 %v431
    %v433 = vpop.xlane.xlu0 %432
    %v434 = vsel %vm230, %v424, 0.0
    %435 = vadd.xlane.f32.xlu0 %v434
    %v436 = vpop.xlane.xlu0 %435
    %v437 = vrcp.pop %v427
    %v438 = vrcp.pop %v430
    %v439 = vrcp.pop %v433
    %v440 = vrcp.pop %v436
    %v441 = vmul.f32 %v418, %v437
    %v442 = vmul.f32 %v420, %v438
    %v443 = vmul.f32 %v422, %v439
    %v444 = vmul.f32 %v424, %v440
    %449 = vrot.lane.b32.xlu0 %v64, 112
    %v450 = vpop.permute.xlu0 %449
    %451 = vrot.lane.b32.xlu0 %v67, 112
    %v452 = vpop.permute.xlu0 %451
    %453 = vrot.lane.b32.xlu0 %v70, 112
    %v454 = vpop.permute.xlu0 %453
    %455 = vrot.lane.b32.xlu0 %v73, 112
    %v456 = vpop.permute.xlu0 %455
    %v462 = vsel %vm230, %v441, 0
    %v465 = vsel %vm230, %v442, 0
    %v468 = vsel %vm230, %v443, 0
    %v471 = vsel %vm230, %v444, 0
    %473 = vmatpush.msra.mxu0 0.0
    %474 = vmatpush.msra.mxu0 0.0
    %475 = vmatpush.msra.mxu0 0.0
    %476 = vmatpush.msra.mxu0 0.0
    %477 = vmatpush.msra.mxu0 0.0
    %478 = vmatpush.msra.mxu0 0.0
    %479 = vmatpush.msra.mxu0 0.0
    %480 = vmatpush.msra.mxu0 0.0
    %481 = vmatpush.msra.mxu0 0.0
    %482 = vmatpush.msra.mxu0 0.0
    %483 = vmatpush.msra.mxu0 0.0
    %484 = vmatpush.msra.mxu0 0.0
    %485 = vmatpush.msra.mxu0 %v456
    %486 = vmatpush.msra.mxu0 %v454
    %487 = vmatpush.msra.mxu0 %v452
    %488 = vmatpush.msra.mxu0 %v450
    %489 = vmatmul.f32.gmra.mxu0 %v462
    %v490 = vpop.f32.mrf.mxu0
    %v491 = vadd.f32 0.0, %v490
    %492 = vmatmul.f32.gmra.mxu0 %v465
    %v493 = vpop.f32.mrf.mxu0
    %v494 = vadd.f32 0.0, %v493
    %495 = vmatmul.f32.gmra.mxu0 %v468
    %v496 = vpop.f32.mrf.mxu0
    %v497 = vadd.f32 0.0, %v496
    %498 = vmatmul.f32.gmra.mxu0 %v471
    %v499 = vpop.f32.mrf.mxu0
    %v500 = vadd.f32 0.0, %v499
    %501 = vdwg.mxu0
    %502 = vrot.lane.b32.xlu0 %v95, 126
    %v503 = vpop.permute.xlu0 %502
    %504 = vrot.lane.b32.xlu0 %v98, 126
    %v505 = vpop.permute.xlu0 %504
    %506 = vrot.lane.b32.xlu0 %v101, 126
    %v507 = vpop.permute.xlu0 %506
    %508 = vrot.lane.b32.xlu0 %v104, 126
    %v509 = vpop.permute.xlu0 %508
    %514 = vxpose.xlu0.b32.start [1/16] %v503, 128
    %515 = vxpose.xlu0.b32.cont [2/16] %v505, 128
    %516 = vxpose.xlu0.b32.cont [3/16] %v507, 128
    %517 = vxpose.xlu0.b32.cont [4/16] %v509, 128
    %518 = vxpose.xlu0.b32.cont [5/16] 0.0, 128
    %519 = vxpose.xlu0.b32.cont [6/16] 0.0, 128
    %520 = vxpose.xlu0.b32.cont [7/16] 0.0, 128
    %521 = vxpose.xlu0.b32.cont [8/16] 0.0, 128
    %522 = vxpose.xlu0.b32.cont [9/16] 0.0, 128
    %523 = vxpose.xlu0.b32.cont [10/16] 0.0, 128
    %524 = vxpose.xlu0.b32.cont [11/16] 0.0, 128
    %525 = vxpose.xlu0.b32.cont [12/16] 0.0, 128
    %526 = vxpose.xlu0.b32.cont [13/16] 0.0, 128
    %527 = vxpose.xlu0.b32.cont [14/16] 0.0, 128
    %528 = vxpose.xlu0.b32.cont [15/16] 0.0, 128
    %529 = vxpose.xlu0.b32.end [16/16] 0.0, 128
    %v530 = vpop.trf.xlu0
    %v531 = vpop.trf.xlu0
    %v532 = vpop.trf.xlu0
    %v533 = vpop.trf.xlu0
    %v534 = vpop.trf.xlu0
    %v535 = vpop.trf.xlu0
    %v536 = vpop.trf.xlu0
    %v537 = vpop.trf.xlu0
    %v538 = vpop.trf.xlu0
    %v539 = vpop.trf.xlu0
    %v540 = vpop.trf.xlu0
    %v541 = vpop.trf.xlu0
    %v542 = vpop.trf.xlu0
    %v543 = vpop.trf.xlu0
    %v544 = vpop.trf.xlu0
    %v545 = vpop.trf.xlu0
    %546 = vset.pattern.permute.xlu0 2
    %547 = vperm.xlu0 %546, %v142
    %v548 = vpop.permute.xlu0 %547
    %550 = vset.pattern.permute.xlu0 2
    %551 = vperm.xlu0 %550, %v145
    %v552 = vpop.permute.xlu0 %551
    %554 = vset.pattern.permute.xlu0 2
    %555 = vperm.xlu0 %554, %v148
    %v556 = vpop.permute.xlu0 %555
    %558 = vset.pattern.permute.xlu0 2
    %559 = vperm.xlu0 %558, %v151
    %v560 = vpop.permute.xlu0 %559
    %v562 = vperm.slane %v530, 0
    %v563 = vadd.f32 %v548, %v562
    %v564 = vadd.f32 %v552, %v562
    %v565 = vadd.f32 %v556, %v562
    %v566 = vadd.f32 %v560, %v562
    %vm567 = vcmp.gt.f32.partialorder %v563, 0.0
    %vm568 = vcmp.gt.f32.partialorder %v564, 0.0
    %vm569 = vcmp.gt.f32.partialorder %v565, 0.0
    %vm570 = vcmp.gt.f32.partialorder %v566, 0.0
    %v571 = vmul.f32 %v563, 0.2
    %v572 = vmul.f32 %v564, 0.2
    %v573 = vmul.f32 %v565, 0.2
    %v574 = vmul.f32 %v566, 0.2
    %v575 = vsel %vm567, %v563, %v571
    %v576 = vsel %vm568, %v564, %v572
    %v577 = vsel %vm569, %v565, %v573
    %v578 = vsel %vm570, %v566, %v574
    %v579 = vadd.f32 %v575, %v153
    %v580 = vadd.f32 %v576, %v154
    %v581 = vadd.f32 %v577, %v155
    %v582 = vadd.f32 %v578, %v156
    %v583 = vsel %vm230, %v579, -inf
    %584 = vmax.xlane.f32.xlu0 %v583
    %v585 = vpop.xlane.xlu0 %584
    %v586 = vsel %vm230, %v580, -inf
    %587 = vmax.xlane.f32.xlu0 %v586
    %v588 = vpop.xlane.xlu0 %587
    %v589 = vsel %vm230, %v581, -inf
    %590 = vmax.xlane.f32.xlu0 %v589
    %v591 = vpop.xlane.xlu0 %590
    %v592 = vsel %vm230, %v582, -inf
    %593 = vmax.xlane.f32.xlu0 %v592
    %v594 = vpop.xlane.xlu0 %593
    %v595 = vsub.f32 %v579, %v585
    %v596 = vsub.f32 %v580, %v588
    %v597 = vsub.f32 %v581, %v591
    %v598 = vsub.f32 %v582, %v594
    %v599 = vmul.f32 %v595, 1.442695
    %v600 = vpow.pop %v599
    %v601 = vmul.f32 %v596, 1.442695
    %v602 = vpow.pop %v601
    %v603 = vmul.f32 %v597, 1.442695
    %v604 = vpow.pop %v603
    %v605 = vmul.f32 %v598, 1.442695
    %v606 = vpow.pop %v605
    %v607 = vsel %vm230, %v600, 0.0
    %608 = vadd.xlane.f32.xlu0 %v607
    %v609 = vpop.xlane.xlu0 %608
    %v610 = vsel %vm230, %v602, 0.0
    %611 = vadd.xlane.f32.xlu0 %v610
    %v612 = vpop.xlane.xlu0 %611
    %v613 = vsel %vm230, %v604, 0.0
    %614 = vadd.xlane.f32.xlu0 %v613
    %v615 = vpop.xlane.xlu0 %614
    %v616 = vsel %vm230, %v606, 0.0
    %617 = vadd.xlane.f32.xlu0 %v616
    %v618 = vpop.xlane.xlu0 %617
    %v619 = vrcp.pop %v609
    %v620 = vrcp.pop %v612
    %v621 = vrcp.pop %v615
    %v622 = vrcp.pop %v618
    %v623 = vmul.f32 %v600, %v619
    %v624 = vmul.f32 %v602, %v620
    %v625 = vmul.f32 %v604, %v621
    %v626 = vmul.f32 %v606, %v622
    %627 = vrot.lane.b32.xlu0 %v64, 96
    %v628 = vpop.permute.xlu0 %627
    %629 = vrot.lane.b32.xlu0 %v67, 96
    %v630 = vpop.permute.xlu0 %629
    %631 = vrot.lane.b32.xlu0 %v70, 96
    %v632 = vpop.permute.xlu0 %631
    %633 = vrot.lane.b32.xlu0 %v73, 96
    %v634 = vpop.permute.xlu0 %633
    %v640 = vsel %vm230, %v623, 0
    %v643 = vsel %vm230, %v624, 0
    %v646 = vsel %vm230, %v625, 0
    %v649 = vsel %vm230, %v626, 0
    %651 = vmatpush.msra.mxu0 0.0
    %652 = vmatpush.msra.mxu0 0.0
    %653 = vmatpush.msra.mxu0 0.0
    %654 = vmatpush.msra.mxu0 0.0
    %655 = vmatpush.msra.mxu0 0.0
    %656 = vmatpush.msra.mxu0 0.0
    %657 = vmatpush.msra.mxu0 0.0
    %658 = vmatpush.msra.mxu0 0.0
    %659 = vmatpush.msra.mxu0 0.0
    %660 = vmatpush.msra.mxu0 0.0
    %661 = vmatpush.msra.mxu0 0.0
    %662 = vmatpush.msra.mxu0 0.0
    %663 = vmatpush.msra.mxu0 %v634
    %664 = vmatpush.msra.mxu0 %v632
    %665 = vmatpush.msra.mxu0 %v630
    %666 = vmatpush.msra.mxu0 %v628
    %667 = vmatmul.f32.gmra.mxu0 %v640
    %v668 = vpop.f32.mrf.mxu0
    %v669 = vadd.f32 0.0, %v668
    %670 = vmatmul.f32.gmra.mxu0 %v643
    %v671 = vpop.f32.mrf.mxu0
    %v672 = vadd.f32 0.0, %v671
    %673 = vmatmul.f32.gmra.mxu0 %v646
    %v674 = vpop.f32.mrf.mxu0
    %v675 = vadd.f32 0.0, %v674
    %676 = vmatmul.f32.gmra.mxu0 %v649
    %v677 = vpop.f32.mrf.mxu0
    %v678 = vadd.f32 0.0, %v677
    %679 = vdwg.mxu0
    %680 = vrot.lane.b32.xlu0 %v95, 125
    %v681 = vpop.permute.xlu0 %680
    %682 = vrot.lane.b32.xlu0 %v98, 125
    %v683 = vpop.permute.xlu0 %682
    %684 = vrot.lane.b32.xlu0 %v101, 125
    %v685 = vpop.permute.xlu0 %684
    %686 = vrot.lane.b32.xlu0 %v104, 125
    %v687 = vpop.permute.xlu0 %686
    %692 = vxpose.xlu0.b32.start [1/16] %v681, 128
    %693 = vxpose.xlu0.b32.cont [2/16] %v683, 128
    %694 = vxpose.xlu0.b32.cont [3/16] %v685, 128
    %695 = vxpose.xlu0.b32.cont [4/16] %v687, 128
    %696 = vxpose.xlu0.b32.cont [5/16] 0.0, 128
    %697 = vxpose.xlu0.b32.cont [6/16] 0.0, 128
    %698 = vxpose.xlu0.b32.cont [7/16] 0.0, 128
    %699 = vxpose.xlu0.b32.cont [8/16] 0.0, 128
    %700 = vxpose.xlu0.b32.cont [9/16] 0.0, 128
    %701 = vxpose.xlu0.b32.cont [10/16] 0.0, 128
    %702 = vxpose.xlu0.b32.cont [11/16] 0.0, 128
    %703 = vxpose.xlu0.b32.cont [12/16] 0.0, 128
    %704 = vxpose.xlu0.b32.cont [13/16] 0.0, 128
    %705 = vxpose.xlu0.b32.cont [14/16] 0.0, 128
    %706 = vxpose.xlu0.b32.cont [15/16] 0.0, 128
    %707 = vxpose.xlu0.b32.end [16/16] 0.0, 128
    %v708 = vpop.trf.xlu0
    %v709 = vpop.trf.xlu0
    %v710 = vpop.trf.xlu0
    %v711 = vpop.trf.xlu0
    %v712 = vpop.trf.xlu0
    %v713 = vpop.trf.xlu0
    %v714 = vpop.trf.xlu0
    %v715 = vpop.trf.xlu0
    %v716 = vpop.trf.xlu0
    %v717 = vpop.trf.xlu0
    %v718 = vpop.trf.xlu0
    %v719 = vpop.trf.xlu0
    %v720 = vpop.trf.xlu0
    %v721 = vpop.trf.xlu0
    %v722 = vpop.trf.xlu0
    %v723 = vpop.trf.xlu0
    %724 = vset.pattern.permute.xlu0 3
    %725 = vperm.xlu0 %724, %v142
    %v726 = vpop.permute.xlu0 %725
    %728 = vset.pattern.permute.xlu0 3
    %729 = vperm.xlu0 %728, %v145
    %v730 = vpop.permute.xlu0 %729
    %732 = vset.pattern.permute.xlu0 3
    %733 = vperm.xlu0 %732, %v148
    %v734 = vpop.permute.xlu0 %733
    %736 = vset.pattern.permute.xlu0 3
    %737 = vperm.xlu0 %736, %v151
    %v738 = vpop.permute.xlu0 %737
    %v740 = vperm.slane %v708, 0
    %v741 = vadd.f32 %v726, %v740
    %v742 = vadd.f32 %v730, %v740
    %v743 = vadd.f32 %v734, %v740
    %v744 = vadd.f32 %v738, %v740
    %vm745 = vcmp.gt.f32.partialorder %v741, 0.0
    %vm746 = vcmp.gt.f32.partialorder %v742, 0.0
    %vm747 = vcmp.gt.f32.partialorder %v743, 0.0
    %vm748 = vcmp.gt.f32.partialorder %v744, 0.0
    %v749 = vmul.f32 %v741, 0.2
    %v750 = vmul.f32 %v742, 0.2
    %v751 = vmul.f32 %v743, 0.2
    %v752 = vmul.f32 %v744, 0.2
    %v753 = vsel %vm745, %v741, %v749
    %v754 = vsel %vm746, %v742, %v750
    %v755 = vsel %vm747, %v743, %v751
    %v756 = vsel %vm748, %v744, %v752
    %v757 = vadd.f32 %v753, %v153
    %v758 = vadd.f32 %v754, %v154
    %v759 = vadd.f32 %v755, %v155
    %v760 = vadd.f32 %v756, %v156
    %v761 = vsel %vm230, %v757, -inf
    %762 = vmax.xlane.f32.xlu0 %v761
    %v763 = vpop.xlane.xlu0 %762
    %v764 = vsel %vm230, %v758, -inf
    %765 = vmax.xlane.f32.xlu0 %v764
    %v766 = vpop.xlane.xlu0 %765
    %v767 = vsel %vm230, %v759, -inf
    %768 = vmax.xlane.f32.xlu0 %v767
    %v769 = vpop.xlane.xlu0 %768
    %v770 = vsel %vm230, %v760, -inf
    %771 = vmax.xlane.f32.xlu0 %v770
    %v772 = vpop.xlane.xlu0 %771
    %v773 = vsub.f32 %v757, %v763
    %v774 = vsub.f32 %v758, %v766
    %v775 = vsub.f32 %v759, %v769
    %v776 = vsub.f32 %v760, %v772
    %v777 = vmul.f32 %v773, 1.442695
    %v778 = vpow.pop %v777
    %v779 = vmul.f32 %v774, 1.442695
    %v780 = vpow.pop %v779
    %v781 = vmul.f32 %v775, 1.442695
    %v782 = vpow.pop %v781
    %v783 = vmul.f32 %v776, 1.442695
    %v784 = vpow.pop %v783
    %v785 = vsel %vm230, %v778, 0.0
    %786 = vadd.xlane.f32.xlu0 %v785
    %v787 = vpop.xlane.xlu0 %786
    %v788 = vsel %vm230, %v780, 0.0
    %789 = vadd.xlane.f32.xlu0 %v788
    %v790 = vpop.xlane.xlu0 %789
    %v791 = vsel %vm230, %v782, 0.0
    %792 = vadd.xlane.f32.xlu0 %v791
    %v793 = vpop.xlane.xlu0 %792
    %v794 = vsel %vm230, %v784, 0.0
    %795 = vadd.xlane.f32.xlu0 %v794
    %v796 = vpop.xlane.xlu0 %795
    %v797 = vrcp.pop %v787
    %v798 = vrcp.pop %v790
    %v799 = vrcp.pop %v793
    %v800 = vrcp.pop %v796
    %v801 = vmul.f32 %v778, %v797
    %v802 = vmul.f32 %v780, %v798
    %v803 = vmul.f32 %v782, %v799
    %v804 = vmul.f32 %v784, %v800
    %805 = vrot.lane.b32.xlu0 %v64, 80
    %v806 = vpop.permute.xlu0 %805
    %807 = vrot.lane.b32.xlu0 %v67, 80
    %v808 = vpop.permute.xlu0 %807
    %809 = vrot.lane.b32.xlu0 %v70, 80
    %v810 = vpop.permute.xlu0 %809
    %811 = vrot.lane.b32.xlu0 %v73, 80
    %v812 = vpop.permute.xlu0 %811
    %v818 = vsel %vm230, %v801, 0
    %v821 = vsel %vm230, %v802, 0
    %v824 = vsel %vm230, %v803, 0
    %v827 = vsel %vm230, %v804, 0
    %829 = vmatpush.msra.mxu0 0.0
    %830 = vmatpush.msra.mxu0 0.0
    %831 = vmatpush.msra.mxu0 0.0
    %832 = vmatpush.msra.mxu0 0.0
    %833 = vmatpush.msra.mxu0 0.0
    %834 = vmatpush.msra.mxu0 0.0
    %835 = vmatpush.msra.mxu0 0.0
    %836 = vmatpush.msra.mxu0 0.0
    %837 = vmatpush.msra.mxu0 0.0
    %838 = vmatpush.msra.mxu0 0.0
    %839 = vmatpush.msra.mxu0 0.0
    %840 = vmatpush.msra.mxu0 0.0
    %841 = vmatpush.msra.mxu0 %v812
    %842 = vmatpush.msra.mxu0 %v810
    %843 = vmatpush.msra.mxu0 %v808
    %844 = vmatpush.msra.mxu0 %v806
    %845 = vmatmul.f32.gmra.mxu0 %v818
    %v846 = vpop.f32.mrf.mxu0
    %v847 = vadd.f32 0.0, %v846
    %848 = vmatmul.f32.gmra.mxu0 %v821
    %v849 = vpop.f32.mrf.mxu0
    %v850 = vadd.f32 0.0, %v849
    %851 = vmatmul.f32.gmra.mxu0 %v824
    %v852 = vpop.f32.mrf.mxu0
    %v853 = vadd.f32 0.0, %v852
    %854 = vmatmul.f32.gmra.mxu0 %v827
    %v855 = vpop.f32.mrf.mxu0
    %v856 = vadd.f32 0.0, %v855
    %857 = vdwg.mxu0
    %858 = vrot.lane.b32.xlu0 %v95, 124
    %v859 = vpop.permute.xlu0 %858
    %860 = vrot.lane.b32.xlu0 %v98, 124
    %v861 = vpop.permute.xlu0 %860
    %862 = vrot.lane.b32.xlu0 %v101, 124
    %v863 = vpop.permute.xlu0 %862
    %864 = vrot.lane.b32.xlu0 %v104, 124
    %v865 = vpop.permute.xlu0 %864
    %870 = vxpose.xlu0.b32.start [1/16] %v859, 128
    %871 = vxpose.xlu0.b32.cont [2/16] %v861, 128
    %872 = vxpose.xlu0.b32.cont [3/16] %v863, 128
    %873 = vxpose.xlu0.b32.cont [4/16] %v865, 128
    %874 = vxpose.xlu0.b32.cont [5/16] 0.0, 128
    %875 = vxpose.xlu0.b32.cont [6/16] 0.0, 128
    %876 = vxpose.xlu0.b32.cont [7/16] 0.0, 128
    %877 = vxpose.xlu0.b32.cont [8/16] 0.0, 128
    %878 = vxpose.xlu0.b32.cont [9/16] 0.0, 128
    %879 = vxpose.xlu0.b32.cont [10/16] 0.0, 128
    %880 = vxpose.xlu0.b32.cont [11/16] 0.0, 128
    %881 = vxpose.xlu0.b32.cont [12/16] 0.0, 128
    %882 = vxpose.xlu0.b32.cont [13/16] 0.0, 128
    %883 = vxpose.xlu0.b32.cont [14/16] 0.0, 128
    %884 = vxpose.xlu0.b32.cont [15/16] 0.0, 128
    %885 = vxpose.xlu0.b32.end [16/16] 0.0, 128
    %v886 = vpop.trf.xlu0
    %v887 = vpop.trf.xlu0
    %v888 = vpop.trf.xlu0
    %v889 = vpop.trf.xlu0
    %v890 = vpop.trf.xlu0
    %v891 = vpop.trf.xlu0
    %v892 = vpop.trf.xlu0
    %v893 = vpop.trf.xlu0
    %v894 = vpop.trf.xlu0
    %v895 = vpop.trf.xlu0
    %v896 = vpop.trf.xlu0
    %v897 = vpop.trf.xlu0
    %v898 = vpop.trf.xlu0
    %v899 = vpop.trf.xlu0
    %v900 = vpop.trf.xlu0
    %v901 = vpop.trf.xlu0
    %902 = vset.pattern.permute.xlu0 4
    %903 = vperm.xlu0 %902, %v142
    %v904 = vpop.permute.xlu0 %903
    %906 = vset.pattern.permute.xlu0 4
    %907 = vperm.xlu0 %906, %v145
    %v908 = vpop.permute.xlu0 %907
    %910 = vset.pattern.permute.xlu0 4
    %911 = vperm.xlu0 %910, %v148
    %v912 = vpop.permute.xlu0 %911
    %914 = vset.pattern.permute.xlu0 4
    %915 = vperm.xlu0 %914, %v151
    %v916 = vpop.permute.xlu0 %915
    %v918 = vperm.slane %v886, 0
    %v919 = vadd.f32 %v904, %v918
    %v920 = vadd.f32 %v908, %v918
    %v921 = vadd.f32 %v912, %v918
    %v922 = vadd.f32 %v916, %v918
    %vm923 = vcmp.gt.f32.partialorder %v919, 0.0
    %vm924 = vcmp.gt.f32.partialorder %v920, 0.0
    %vm925 = vcmp.gt.f32.partialorder %v921, 0.0
    %vm926 = vcmp.gt.f32.partialorder %v922, 0.0
    %v927 = vmul.f32 %v919, 0.2
    %v928 = vmul.f32 %v920, 0.2
    %v929 = vmul.f32 %v921, 0.2
    %v930 = vmul.f32 %v922, 0.2
    %v931 = vsel %vm923, %v919, %v927
    %v932 = vsel %vm924, %v920, %v928
    %v933 = vsel %vm925, %v921, %v929
    %v934 = vsel %vm926, %v922, %v930
    %v935 = vadd.f32 %v931, %v153
    %v936 = vadd.f32 %v932, %v154
    %v937 = vadd.f32 %v933, %v155
    %v938 = vadd.f32 %v934, %v156
    %v939 = vsel %vm230, %v935, -inf
    %940 = vmax.xlane.f32.xlu0 %v939
    %v941 = vpop.xlane.xlu0 %940
    %v942 = vsel %vm230, %v936, -inf
    %943 = vmax.xlane.f32.xlu0 %v942
    %v944 = vpop.xlane.xlu0 %943
    %v945 = vsel %vm230, %v937, -inf
    %946 = vmax.xlane.f32.xlu0 %v945
    %v947 = vpop.xlane.xlu0 %946
    %v948 = vsel %vm230, %v938, -inf
    %949 = vmax.xlane.f32.xlu0 %v948
    %v950 = vpop.xlane.xlu0 %949
    %v951 = vsub.f32 %v935, %v941
    %v952 = vsub.f32 %v936, %v944
    %v953 = vsub.f32 %v937, %v947
    %v954 = vsub.f32 %v938, %v950
    %v955 = vmul.f32 %v951, 1.442695
    %v956 = vpow.pop %v955
    %v957 = vmul.f32 %v952, 1.442695
    %v958 = vpow.pop %v957
    %v959 = vmul.f32 %v953, 1.442695
    %v960 = vpow.pop %v959
    %v961 = vmul.f32 %v954, 1.442695
    %v962 = vpow.pop %v961
    %v963 = vsel %vm230, %v956, 0.0
    %964 = vadd.xlane.f32.xlu0 %v963
    %v965 = vpop.xlane.xlu0 %964
    %v966 = vsel %vm230, %v958, 0.0
    %967 = vadd.xlane.f32.xlu0 %v966
    %v968 = vpop.xlane.xlu0 %967
    %v969 = vsel %vm230, %v960, 0.0
    %970 = vadd.xlane.f32.xlu0 %v969
    %v971 = vpop.xlane.xlu0 %970
    %v972 = vsel %vm230, %v962, 0.0
    %973 = vadd.xlane.f32.xlu0 %v972
    %v974 = vpop.xlane.xlu0 %973
    %v975 = vrcp.pop %v965
    %v976 = vrcp.pop %v968
    %v977 = vrcp.pop %v971
    %v978 = vrcp.pop %v974
    %v979 = vmul.f32 %v956, %v975
    %v980 = vmul.f32 %v958, %v976
    %v981 = vmul.f32 %v960, %v977
    %v982 = vmul.f32 %v962, %v978
    %983 = vrot.lane.b32.xlu0 %v64, 64
    %v984 = vpop.permute.xlu0 %983
    %985 = vrot.lane.b32.xlu0 %v67, 64
    %v986 = vpop.permute.xlu0 %985
    %987 = vrot.lane.b32.xlu0 %v70, 64
    %v988 = vpop.permute.xlu0 %987
    %989 = vrot.lane.b32.xlu0 %v73, 64
    %v990 = vpop.permute.xlu0 %989
    %v996 = vsel %vm230, %v979, 0
    %v999 = vsel %vm230, %v980, 0
    %v1002 = vsel %vm230, %v981, 0
    %v1005 = vsel %vm230, %v982, 0
    %1007 = vmatpush.msra.mxu0 0.0
    %1008 = vmatpush.msra.mxu0 0.0
    %1009 = vmatpush.msra.mxu0 0.0
    %1010 = vmatpush.msra.mxu0 0.0
    %1011 = vmatpush.msra.mxu0 0.0
    %1012 = vmatpush.msra.mxu0 0.0
    %1013 = vmatpush.msra.mxu0 0.0
    %1014 = vmatpush.msra.mxu0 0.0
    %1015 = vmatpush.msra.mxu0 0.0
    %1016 = vmatpush.msra.mxu0 0.0
    %1017 = vmatpush.msra.mxu0 0.0
    %1018 = vmatpush.msra.mxu0 0.0
    %1019 = vmatpush.msra.mxu0 %v990
    %1020 = vmatpush.msra.mxu0 %v988
    %1021 = vmatpush.msra.mxu0 %v986
    %1022 = vmatpush.msra.mxu0 %v984
    %1023 = vmatmul.f32.gmra.mxu0 %v996
    %v1024 = vpop.f32.mrf.mxu0
    %v1025 = vadd.f32 0.0, %v1024
    %1026 = vmatmul.f32.gmra.mxu0 %v999
    %v1027 = vpop.f32.mrf.mxu0
    %v1028 = vadd.f32 0.0, %v1027
    %1029 = vmatmul.f32.gmra.mxu0 %v1002
    %v1030 = vpop.f32.mrf.mxu0
    %v1031 = vadd.f32 0.0, %v1030
    %1032 = vmatmul.f32.gmra.mxu0 %v1005
    %v1033 = vpop.f32.mrf.mxu0
    %v1034 = vadd.f32 0.0, %v1033
    %1035 = vdwg.mxu0
    %1036 = vrot.lane.b32.xlu0 %v95, 123
    %v1037 = vpop.permute.xlu0 %1036
    %1038 = vrot.lane.b32.xlu0 %v98, 123
    %v1039 = vpop.permute.xlu0 %1038
    %1040 = vrot.lane.b32.xlu0 %v101, 123
    %v1041 = vpop.permute.xlu0 %1040
    %1042 = vrot.lane.b32.xlu0 %v104, 123
    %v1043 = vpop.permute.xlu0 %1042
    %1048 = vxpose.xlu0.b32.start [1/16] %v1037, 128
    %1049 = vxpose.xlu0.b32.cont [2/16] %v1039, 128
    %1050 = vxpose.xlu0.b32.cont [3/16] %v1041, 128
    %1051 = vxpose.xlu0.b32.cont [4/16] %v1043, 128
    %1052 = vxpose.xlu0.b32.cont [5/16] 0.0, 128
    %1053 = vxpose.xlu0.b32.cont [6/16] 0.0, 128
    %1054 = vxpose.xlu0.b32.cont [7/16] 0.0, 128
    %1055 = vxpose.xlu0.b32.cont [8/16] 0.0, 128
    %1056 = vxpose.xlu0.b32.cont [9/16] 0.0, 128
    %1057 = vxpose.xlu0.b32.cont [10/16] 0.0, 128
    %1058 = vxpose.xlu0.b32.cont [11/16] 0.0, 128
    %1059 = vxpose.xlu0.b32.cont [12/16] 0.0, 128
    %1060 = vxpose.xlu0.b32.cont [13/16] 0.0, 128
    %1061 = vxpose.xlu0.b32.cont [14/16] 0.0, 128
    %1062 = vxpose.xlu0.b32.cont [15/16] 0.0, 128
    %1063 = vxpose.xlu0.b32.end [16/16] 0.0, 128
    %v1064 = vpop.trf.xlu0
    %v1065 = vpop.trf.xlu0
    %v1066 = vpop.trf.xlu0
    %v1067 = vpop.trf.xlu0
    %v1068 = vpop.trf.xlu0
    %v1069 = vpop.trf.xlu0
    %v1070 = vpop.trf.xlu0
    %v1071 = vpop.trf.xlu0
    %v1072 = vpop.trf.xlu0
    %v1073 = vpop.trf.xlu0
    %v1074 = vpop.trf.xlu0
    %v1075 = vpop.trf.xlu0
    %v1076 = vpop.trf.xlu0
    %v1077 = vpop.trf.xlu0
    %v1078 = vpop.trf.xlu0
    %v1079 = vpop.trf.xlu0
    %1080 = vset.pattern.permute.xlu0 5
    %1081 = vperm.xlu0 %1080, %v142
    %v1082 = vpop.permute.xlu0 %1081
    %1084 = vset.pattern.permute.xlu0 5
    %1085 = vperm.xlu0 %1084, %v145
    %v1086 = vpop.permute.xlu0 %1085
    %1088 = vset.pattern.permute.xlu0 5
    %1089 = vperm.xlu0 %1088, %v148
    %v1090 = vpop.permute.xlu0 %1089
    %1092 = vset.pattern.permute.xlu0 5
    %1093 = vperm.xlu0 %1092, %v151
    %v1094 = vpop.permute.xlu0 %1093
    %v1096 = vperm.slane %v1064, 0
    %v1097 = vadd.f32 %v1082, %v1096
    %v1098 = vadd.f32 %v1086, %v1096
    %v1099 = vadd.f32 %v1090, %v1096
    %v1100 = vadd.f32 %v1094, %v1096
    %vm1101 = vcmp.gt.f32.partialorder %v1097, 0.0
    %vm1102 = vcmp.gt.f32.partialorder %v1098, 0.0
    %vm1103 = vcmp.gt.f32.partialorder %v1099, 0.0
    %vm1104 = vcmp.gt.f32.partialorder %v1100, 0.0
    %v1105 = vmul.f32 %v1097, 0.2
    %v1106 = vmul.f32 %v1098, 0.2
    %v1107 = vmul.f32 %v1099, 0.2
    %v1108 = vmul.f32 %v1100, 0.2
    %v1109 = vsel %vm1101, %v1097, %v1105
    %v1110 = vsel %vm1102, %v1098, %v1106
    %v1111 = vsel %vm1103, %v1099, %v1107
    %v1112 = vsel %vm1104, %v1100, %v1108
    %v1113 = vadd.f32 %v1109, %v153
    %v1114 = vadd.f32 %v1110, %v154
    %v1115 = vadd.f32 %v1111, %v155
    %v1116 = vadd.f32 %v1112, %v156
    %v1117 = vsel %vm230, %v1113, -inf
    %1118 = vmax.xlane.f32.xlu0 %v1117
    %v1119 = vpop.xlane.xlu0 %1118
    %v1120 = vsel %vm230, %v1114, -inf
    %1121 = vmax.xlane.f32.xlu0 %v1120
    %v1122 = vpop.xlane.xlu0 %1121
    %v1123 = vsel %vm230, %v1115, -inf
    %1124 = vmax.xlane.f32.xlu0 %v1123
    %v1125 = vpop.xlane.xlu0 %1124
    %v1126 = vsel %vm230, %v1116, -inf
    %1127 = vmax.xlane.f32.xlu0 %v1126
    %v1128 = vpop.xlane.xlu0 %1127
    %v1129 = vsub.f32 %v1113, %v1119
    %v1130 = vsub.f32 %v1114, %v1122
    %v1131 = vsub.f32 %v1115, %v1125
    %v1132 = vsub.f32 %v1116, %v1128
    %v1133 = vmul.f32 %v1129, 1.442695
    %v1134 = vpow.pop %v1133
    %v1135 = vmul.f32 %v1130, 1.442695
    %v1136 = vpow.pop %v1135
    %v1137 = vmul.f32 %v1131, 1.442695
    %v1138 = vpow.pop %v1137
    %v1139 = vmul.f32 %v1132, 1.442695
    %v1140 = vpow.pop %v1139
    %v1141 = vsel %vm230, %v1134, 0.0
    %1142 = vadd.xlane.f32.xlu0 %v1141
    %v1143 = vpop.xlane.xlu0 %1142
    %v1144 = vsel %vm230, %v1136, 0.0
    %1145 = vadd.xlane.f32.xlu0 %v1144
    %v1146 = vpop.xlane.xlu0 %1145
    %v1147 = vsel %vm230, %v1138, 0.0
    %1148 = vadd.xlane.f32.xlu0 %v1147
    %v1149 = vpop.xlane.xlu0 %1148
    %v1150 = vsel %vm230, %v1140, 0.0
    %1151 = vadd.xlane.f32.xlu0 %v1150
    %v1152 = vpop.xlane.xlu0 %1151
    %v1153 = vrcp.pop %v1143
    %v1154 = vrcp.pop %v1146
    %v1155 = vrcp.pop %v1149
    %v1156 = vrcp.pop %v1152
    %v1157 = vmul.f32 %v1134, %v1153
    %v1158 = vmul.f32 %v1136, %v1154
    %v1159 = vmul.f32 %v1138, %v1155
    %v1160 = vmul.f32 %v1140, %v1156
    %1161 = vrot.lane.b32.xlu0 %v64, 48
    %v1162 = vpop.permute.xlu0 %1161
    %1163 = vrot.lane.b32.xlu0 %v67, 48
    %v1164 = vpop.permute.xlu0 %1163
    %1165 = vrot.lane.b32.xlu0 %v70, 48
    %v1166 = vpop.permute.xlu0 %1165
    %1167 = vrot.lane.b32.xlu0 %v73, 48
    %v1168 = vpop.permute.xlu0 %1167
    %v1174 = vsel %vm230, %v1157, 0
    %v1177 = vsel %vm230, %v1158, 0
    %v1180 = vsel %vm230, %v1159, 0
    %v1183 = vsel %vm230, %v1160, 0
    %1185 = vmatpush.msra.mxu0 0.0
    %1186 = vmatpush.msra.mxu0 0.0
    %1187 = vmatpush.msra.mxu0 0.0
    %1188 = vmatpush.msra.mxu0 0.0
    %1189 = vmatpush.msra.mxu0 0.0
    %1190 = vmatpush.msra.mxu0 0.0
    %1191 = vmatpush.msra.mxu0 0.0
    %1192 = vmatpush.msra.mxu0 0.0
    %1193 = vmatpush.msra.mxu0 0.0
    %1194 = vmatpush.msra.mxu0 0.0
    %1195 = vmatpush.msra.mxu0 0.0
    %1196 = vmatpush.msra.mxu0 0.0
    %1197 = vmatpush.msra.mxu0 %v1168
    %1198 = vmatpush.msra.mxu0 %v1166
    %1199 = vmatpush.msra.mxu0 %v1164
    %1200 = vmatpush.msra.mxu0 %v1162
    %1201 = vmatmul.f32.gmra.mxu0 %v1174
    %v1202 = vpop.f32.mrf.mxu0
    %v1203 = vadd.f32 0.0, %v1202
    %1204 = vmatmul.f32.gmra.mxu0 %v1177
    %v1205 = vpop.f32.mrf.mxu0
    %v1206 = vadd.f32 0.0, %v1205
    %1207 = vmatmul.f32.gmra.mxu0 %v1180
    %v1208 = vpop.f32.mrf.mxu0
    %v1209 = vadd.f32 0.0, %v1208
    %1210 = vmatmul.f32.gmra.mxu0 %v1183
    %v1211 = vpop.f32.mrf.mxu0
    %v1212 = vadd.f32 0.0, %v1211
    %1213 = vdwg.mxu0
    %1214 = vrot.lane.b32.xlu0 %v95, 122
    %v1215 = vpop.permute.xlu0 %1214
    %1216 = vrot.lane.b32.xlu0 %v98, 122
    %v1217 = vpop.permute.xlu0 %1216
    %1218 = vrot.lane.b32.xlu0 %v101, 122
    %v1219 = vpop.permute.xlu0 %1218
    %1220 = vrot.lane.b32.xlu0 %v104, 122
    %v1221 = vpop.permute.xlu0 %1220
    %1226 = vxpose.xlu0.b32.start [1/16] %v1215, 128
    %1227 = vxpose.xlu0.b32.cont [2/16] %v1217, 128
    %1228 = vxpose.xlu0.b32.cont [3/16] %v1219, 128
    %1229 = vxpose.xlu0.b32.cont [4/16] %v1221, 128
    %1230 = vxpose.xlu0.b32.cont [5/16] 0.0, 128
    %1231 = vxpose.xlu0.b32.cont [6/16] 0.0, 128
    %1232 = vxpose.xlu0.b32.cont [7/16] 0.0, 128
    %1233 = vxpose.xlu0.b32.cont [8/16] 0.0, 128
    %1234 = vxpose.xlu0.b32.cont [9/16] 0.0, 128
    %1235 = vxpose.xlu0.b32.cont [10/16] 0.0, 128
    %1236 = vxpose.xlu0.b32.cont [11/16] 0.0, 128
    %1237 = vxpose.xlu0.b32.cont [12/16] 0.0, 128
    %1238 = vxpose.xlu0.b32.cont [13/16] 0.0, 128
    %1239 = vxpose.xlu0.b32.cont [14/16] 0.0, 128
    %1240 = vxpose.xlu0.b32.cont [15/16] 0.0, 128
    %1241 = vxpose.xlu0.b32.end [16/16] 0.0, 128
    %v1242 = vpop.trf.xlu0
    %v1243 = vpop.trf.xlu0
    %v1244 = vpop.trf.xlu0
    %v1245 = vpop.trf.xlu0
    %v1246 = vpop.trf.xlu0
    %v1247 = vpop.trf.xlu0
    %v1248 = vpop.trf.xlu0
    %v1249 = vpop.trf.xlu0
    %v1250 = vpop.trf.xlu0
    %v1251 = vpop.trf.xlu0
    %v1252 = vpop.trf.xlu0
    %v1253 = vpop.trf.xlu0
    %v1254 = vpop.trf.xlu0
    %v1255 = vpop.trf.xlu0
    %v1256 = vpop.trf.xlu0
    %v1257 = vpop.trf.xlu0
    %1258 = vset.pattern.permute.xlu0 6
    %1259 = vperm.xlu0 %1258, %v142
    %v1260 = vpop.permute.xlu0 %1259
    %1262 = vset.pattern.permute.xlu0 6
    %1263 = vperm.xlu0 %1262, %v145
    %v1264 = vpop.permute.xlu0 %1263
    %1266 = vset.pattern.permute.xlu0 6
    %1267 = vperm.xlu0 %1266, %v148
    %v1268 = vpop.permute.xlu0 %1267
    %1270 = vset.pattern.permute.xlu0 6
    %1271 = vperm.xlu0 %1270, %v151
    %v1272 = vpop.permute.xlu0 %1271
    %v1274 = vperm.slane %v1242, 0
    %v1275 = vadd.f32 %v1260, %v1274
    %v1276 = vadd.f32 %v1264, %v1274
    %v1277 = vadd.f32 %v1268, %v1274
    %v1278 = vadd.f32 %v1272, %v1274
    %vm1279 = vcmp.gt.f32.partialorder %v1275, 0.0
    %vm1280 = vcmp.gt.f32.partialorder %v1276, 0.0
    %vm1281 = vcmp.gt.f32.partialorder %v1277, 0.0
    %vm1282 = vcmp.gt.f32.partialorder %v1278, 0.0
    %v1283 = vmul.f32 %v1275, 0.2
    %v1284 = vmul.f32 %v1276, 0.2
    %v1285 = vmul.f32 %v1277, 0.2
    %v1286 = vmul.f32 %v1278, 0.2
    %v1287 = vsel %vm1279, %v1275, %v1283
    %v1288 = vsel %vm1280, %v1276, %v1284
    %v1289 = vsel %vm1281, %v1277, %v1285
    %v1290 = vsel %vm1282, %v1278, %v1286
    %v1291 = vadd.f32 %v1287, %v153
    %v1292 = vadd.f32 %v1288, %v154
    %v1293 = vadd.f32 %v1289, %v155
    %v1294 = vadd.f32 %v1290, %v156
    %v1295 = vsel %vm230, %v1291, -inf
    %1296 = vmax.xlane.f32.xlu0 %v1295
    %v1297 = vpop.xlane.xlu0 %1296
    %v1298 = vsel %vm230, %v1292, -inf
    %1299 = vmax.xlane.f32.xlu0 %v1298
    %v1300 = vpop.xlane.xlu0 %1299
    %v1301 = vsel %vm230, %v1293, -inf
    %1302 = vmax.xlane.f32.xlu0 %v1301
    %v1303 = vpop.xlane.xlu0 %1302
    %v1304 = vsel %vm230, %v1294, -inf
    %1305 = vmax.xlane.f32.xlu0 %v1304
    %v1306 = vpop.xlane.xlu0 %1305
    %v1307 = vsub.f32 %v1291, %v1297
    %v1308 = vsub.f32 %v1292, %v1300
    %v1309 = vsub.f32 %v1293, %v1303
    %v1310 = vsub.f32 %v1294, %v1306
    %v1311 = vmul.f32 %v1307, 1.442695
    %v1312 = vpow.pop %v1311
    %v1313 = vmul.f32 %v1308, 1.442695
    %v1314 = vpow.pop %v1313
    %v1315 = vmul.f32 %v1309, 1.442695
    %v1316 = vpow.pop %v1315
    %v1317 = vmul.f32 %v1310, 1.442695
    %v1318 = vpow.pop %v1317
    %v1319 = vsel %vm230, %v1312, 0.0
    %1320 = vadd.xlane.f32.xlu0 %v1319
    %v1321 = vpop.xlane.xlu0 %1320
    %v1322 = vsel %vm230, %v1314, 0.0
    %1323 = vadd.xlane.f32.xlu0 %v1322
    %v1324 = vpop.xlane.xlu0 %1323
    %v1325 = vsel %vm230, %v1316, 0.0
    %1326 = vadd.xlane.f32.xlu0 %v1325
    %v1327 = vpop.xlane.xlu0 %1326
    %v1328 = vsel %vm230, %v1318, 0.0
    %1329 = vadd.xlane.f32.xlu0 %v1328
    %v1330 = vpop.xlane.xlu0 %1329
    %v1331 = vrcp.pop %v1321
    %v1332 = vrcp.pop %v1324
    %v1333 = vrcp.pop %v1327
    %v1334 = vrcp.pop %v1330
    %v1335 = vmul.f32 %v1312, %v1331
    %v1336 = vmul.f32 %v1314, %v1332
    %v1337 = vmul.f32 %v1316, %v1333
    %v1338 = vmul.f32 %v1318, %v1334
    %1339 = vrot.lane.b32.xlu0 %v64, 32
    %v1340 = vpop.permute.xlu0 %1339
    %1341 = vrot.lane.b32.xlu0 %v67, 32
    %v1342 = vpop.permute.xlu0 %1341
    %1343 = vrot.lane.b32.xlu0 %v70, 32
    %v1344 = vpop.permute.xlu0 %1343
    %1345 = vrot.lane.b32.xlu0 %v73, 32
    %v1346 = vpop.permute.xlu0 %1345
    %v1352 = vsel %vm230, %v1335, 0
    %v1355 = vsel %vm230, %v1336, 0
    %v1358 = vsel %vm230, %v1337, 0
    %v1361 = vsel %vm230, %v1338, 0
    %1363 = vmatpush.msra.mxu0 0.0
    %1364 = vmatpush.msra.mxu0 0.0
    %1365 = vmatpush.msra.mxu0 0.0
    %1366 = vmatpush.msra.mxu0 0.0
    %1367 = vmatpush.msra.mxu0 0.0
    %1368 = vmatpush.msra.mxu0 0.0
    %1369 = vmatpush.msra.mxu0 0.0
    %1370 = vmatpush.msra.mxu0 0.0
    %1371 = vmatpush.msra.mxu0 0.0
    %1372 = vmatpush.msra.mxu0 0.0
    %1373 = vmatpush.msra.mxu0 0.0
    %1374 = vmatpush.msra.mxu0 0.0
    %1375 = vmatpush.msra.mxu0 %v1346
    %1376 = vmatpush.msra.mxu0 %v1344
    %1377 = vmatpush.msra.mxu0 %v1342
    %1378 = vmatpush.msra.mxu0 %v1340
    %1379 = vmatmul.f32.gmra.mxu0 %v1352
    %v1380 = vpop.f32.mrf.mxu0
    %v1381 = vadd.f32 0.0, %v1380
    %1382 = vmatmul.f32.gmra.mxu0 %v1355
    %v1383 = vpop.f32.mrf.mxu0
    %v1384 = vadd.f32 0.0, %v1383
    %1385 = vmatmul.f32.gmra.mxu0 %v1358
    %v1386 = vpop.f32.mrf.mxu0
    %v1387 = vadd.f32 0.0, %v1386
    %1388 = vmatmul.f32.gmra.mxu0 %v1361
    %v1389 = vpop.f32.mrf.mxu0
    %v1390 = vadd.f32 0.0, %v1389
    %1391 = vdwg.mxu0
    %1392 = vrot.lane.b32.xlu0 %v95, 121
    %v1393 = vpop.permute.xlu0 %1392
    %1394 = vrot.lane.b32.xlu0 %v98, 121
    %v1395 = vpop.permute.xlu0 %1394
    %1396 = vrot.lane.b32.xlu0 %v101, 121
    %v1397 = vpop.permute.xlu0 %1396
    %1398 = vrot.lane.b32.xlu0 %v104, 121
    %v1399 = vpop.permute.xlu0 %1398
    %1404 = vxpose.xlu0.b32.start [1/16] %v1393, 128
    %1405 = vxpose.xlu0.b32.cont [2/16] %v1395, 128
    %1406 = vxpose.xlu0.b32.cont [3/16] %v1397, 128
    %1407 = vxpose.xlu0.b32.cont [4/16] %v1399, 128
    %1408 = vxpose.xlu0.b32.cont [5/16] 0.0, 128
    %1409 = vxpose.xlu0.b32.cont [6/16] 0.0, 128
    %1410 = vxpose.xlu0.b32.cont [7/16] 0.0, 128
    %1411 = vxpose.xlu0.b32.cont [8/16] 0.0, 128
    %1412 = vxpose.xlu0.b32.cont [9/16] 0.0, 128
    %1413 = vxpose.xlu0.b32.cont [10/16] 0.0, 128
    %1414 = vxpose.xlu0.b32.cont [11/16] 0.0, 128
    %1415 = vxpose.xlu0.b32.cont [12/16] 0.0, 128
    %1416 = vxpose.xlu0.b32.cont [13/16] 0.0, 128
    %1417 = vxpose.xlu0.b32.cont [14/16] 0.0, 128
    %1418 = vxpose.xlu0.b32.cont [15/16] 0.0, 128
    %1419 = vxpose.xlu0.b32.end [16/16] 0.0, 128
    %v1420 = vpop.trf.xlu0
    %v1421 = vpop.trf.xlu0
    %v1422 = vpop.trf.xlu0
    %v1423 = vpop.trf.xlu0
    %v1424 = vpop.trf.xlu0
    %v1425 = vpop.trf.xlu0
    %v1426 = vpop.trf.xlu0
    %v1427 = vpop.trf.xlu0
    %v1428 = vpop.trf.xlu0
    %v1429 = vpop.trf.xlu0
    %v1430 = vpop.trf.xlu0
    %v1431 = vpop.trf.xlu0
    %v1432 = vpop.trf.xlu0
    %v1433 = vpop.trf.xlu0
    %v1434 = vpop.trf.xlu0
    %v1435 = vpop.trf.xlu0
    %1436 = vset.pattern.permute.xlu0 7
    %1437 = vperm.xlu0 %1436, %v142
    %v1438 = vpop.permute.xlu0 %1437
    %1440 = vset.pattern.permute.xlu0 7
    %1441 = vperm.xlu0 %1440, %v145
    %v1442 = vpop.permute.xlu0 %1441
    %1444 = vset.pattern.permute.xlu0 7
    %1445 = vperm.xlu0 %1444, %v148
    %v1446 = vpop.permute.xlu0 %1445
    %1448 = vset.pattern.permute.xlu0 7
    %1449 = vperm.xlu0 %1448, %v151
    %v1450 = vpop.permute.xlu0 %1449
    %v1452 = vperm.slane %v1420, 0
    %v1453 = vadd.f32 %v1438, %v1452
    %v1454 = vadd.f32 %v1442, %v1452
    %v1455 = vadd.f32 %v1446, %v1452
    %v1456 = vadd.f32 %v1450, %v1452
    %vm1457 = vcmp.gt.f32.partialorder %v1453, 0.0
    %vm1458 = vcmp.gt.f32.partialorder %v1454, 0.0
    %vm1459 = vcmp.gt.f32.partialorder %v1455, 0.0
    %vm1460 = vcmp.gt.f32.partialorder %v1456, 0.0
    %v1461 = vmul.f32 %v1453, 0.2
    %v1462 = vmul.f32 %v1454, 0.2
    %v1463 = vmul.f32 %v1455, 0.2
    %v1464 = vmul.f32 %v1456, 0.2
    %v1465 = vsel %vm1457, %v1453, %v1461
    %v1466 = vsel %vm1458, %v1454, %v1462
    %v1467 = vsel %vm1459, %v1455, %v1463
    %v1468 = vsel %vm1460, %v1456, %v1464
    %v1469 = vadd.f32 %v1465, %v153
    %v1470 = vadd.f32 %v1466, %v154
    %v1471 = vadd.f32 %v1467, %v155
    %v1472 = vadd.f32 %v1468, %v156
    %v1473 = vsel %vm230, %v1469, -inf
    %1474 = vmax.xlane.f32.xlu0 %v1473
    %v1475 = vpop.xlane.xlu0 %1474
    %v1476 = vsel %vm230, %v1470, -inf
    %1477 = vmax.xlane.f32.xlu0 %v1476
    %v1478 = vpop.xlane.xlu0 %1477
    %v1479 = vsel %vm230, %v1471, -inf
    %1480 = vmax.xlane.f32.xlu0 %v1479
    %v1481 = vpop.xlane.xlu0 %1480
    %v1482 = vsel %vm230, %v1472, -inf
    %1483 = vmax.xlane.f32.xlu0 %v1482
    %v1484 = vpop.xlane.xlu0 %1483
    %v1485 = vsub.f32 %v1469, %v1475
    %v1486 = vsub.f32 %v1470, %v1478
    %v1487 = vsub.f32 %v1471, %v1481
    %v1488 = vsub.f32 %v1472, %v1484
    %v1489 = vmul.f32 %v1485, 1.442695
    %v1490 = vpow.pop %v1489
    %v1491 = vmul.f32 %v1486, 1.442695
    %v1492 = vpow.pop %v1491
    %v1493 = vmul.f32 %v1487, 1.442695
    %v1494 = vpow.pop %v1493
    %v1495 = vmul.f32 %v1488, 1.442695
    %v1496 = vpow.pop %v1495
    %v1497 = vsel %vm230, %v1490, 0.0
    %1498 = vadd.xlane.f32.xlu0 %v1497
    %v1499 = vpop.xlane.xlu0 %1498
    %v1500 = vsel %vm230, %v1492, 0.0
    %1501 = vadd.xlane.f32.xlu0 %v1500
    %v1502 = vpop.xlane.xlu0 %1501
    %v1503 = vsel %vm230, %v1494, 0.0
    %1504 = vadd.xlane.f32.xlu0 %v1503
    %v1505 = vpop.xlane.xlu0 %1504
    %v1506 = vsel %vm230, %v1496, 0.0
    %1507 = vadd.xlane.f32.xlu0 %v1506
    %v1508 = vpop.xlane.xlu0 %1507
    %v1509 = vrcp.pop %v1499
    %v1510 = vrcp.pop %v1502
    %v1511 = vrcp.pop %v1505
    %v1512 = vrcp.pop %v1508
    %v1513 = vmul.f32 %v1490, %v1509
    %v1514 = vmul.f32 %v1492, %v1510
    %v1515 = vmul.f32 %v1494, %v1511
    %v1516 = vmul.f32 %v1496, %v1512
    %1517 = vrot.lane.b32.xlu0 %v64, 16
    %v1518 = vpop.permute.xlu0 %1517
    %1519 = vrot.lane.b32.xlu0 %v67, 16
    %v1520 = vpop.permute.xlu0 %1519
    %1521 = vrot.lane.b32.xlu0 %v70, 16
    %v1522 = vpop.permute.xlu0 %1521
    %1523 = vrot.lane.b32.xlu0 %v73, 16
    %v1524 = vpop.permute.xlu0 %1523
    %v1530 = vsel %vm230, %v1513, 0
    %v1533 = vsel %vm230, %v1514, 0
    %v1536 = vsel %vm230, %v1515, 0
    %v1539 = vsel %vm230, %v1516, 0
    %1541 = vmatpush.msra.mxu0 0.0
    %1542 = vmatpush.msra.mxu0 0.0
    %1543 = vmatpush.msra.mxu0 0.0
    %1544 = vmatpush.msra.mxu0 0.0
    %1545 = vmatpush.msra.mxu0 0.0
    %1546 = vmatpush.msra.mxu0 0.0
    %1547 = vmatpush.msra.mxu0 0.0
    %1548 = vmatpush.msra.mxu0 0.0
    %1549 = vmatpush.msra.mxu0 0.0
    %1550 = vmatpush.msra.mxu0 0.0
    %1551 = vmatpush.msra.mxu0 0.0
    %1552 = vmatpush.msra.mxu0 0.0
    %1553 = vmatpush.msra.mxu0 %v1524
    %1554 = vmatpush.msra.mxu0 %v1522
    %1555 = vmatpush.msra.mxu0 %v1520
    %1556 = vmatpush.msra.mxu0 %v1518
    %1557 = vmatmul.f32.gmra.mxu0 %v1530
    %v1558 = vpop.f32.mrf.mxu0
    %v1559 = vadd.f32 0.0, %v1558
    %1560 = vmatmul.f32.gmra.mxu0 %v1533
    %v1561 = vpop.f32.mrf.mxu0
    %v1562 = vadd.f32 0.0, %v1561
    %1563 = vmatmul.f32.gmra.mxu0 %v1536
    %v1564 = vpop.f32.mrf.mxu0
    %v1565 = vadd.f32 0.0, %v1564
    %1566 = vmatmul.f32.gmra.mxu0 %v1539
    %v1567 = vpop.f32.mrf.mxu0
    %v1568 = vadd.f32 0.0, %v1567
    %1569 = vdwg.mxu0
    %1574 = vrot.lane.b32.xlu0 %v491, 16
    %v1575 = vpop.permute.xlu0 %1574
    %1576 = vrot.lane.b32.xlu0 %v494, 16
    %v1577 = vpop.permute.xlu0 %1576
    %1578 = vrot.lane.b32.xlu0 %v497, 16
    %v1579 = vpop.permute.xlu0 %1578
    %1580 = vrot.lane.b32.xlu0 %v500, 16
    %v1581 = vpop.permute.xlu0 %1580
    %1590 = vrot.lane.b32.xlu0 %v669, 32
    %v1591 = vpop.permute.xlu0 %1590
    %1592 = vrot.lane.b32.xlu0 %v672, 32
    %v1593 = vpop.permute.xlu0 %1592
    %1594 = vrot.lane.b32.xlu0 %v675, 32
    %v1595 = vpop.permute.xlu0 %1594
    %1596 = vrot.lane.b32.xlu0 %v678, 32
    %v1597 = vpop.permute.xlu0 %1596
    %1606 = vrot.lane.b32.xlu0 %v847, 48
    %v1607 = vpop.permute.xlu0 %1606
    %1608 = vrot.lane.b32.xlu0 %v850, 48
    %v1609 = vpop.permute.xlu0 %1608
    %1610 = vrot.lane.b32.xlu0 %v853, 48
    %v1611 = vpop.permute.xlu0 %1610
    %1612 = vrot.lane.b32.xlu0 %v856, 48
    %v1613 = vpop.permute.xlu0 %1612
    %1622 = vrot.lane.b32.xlu0 %v1025, 64
    %v1623 = vpop.permute.xlu0 %1622
    %1624 = vrot.lane.b32.xlu0 %v1028, 64
    %v1625 = vpop.permute.xlu0 %1624
    %1626 = vrot.lane.b32.xlu0 %v1031, 64
    %v1627 = vpop.permute.xlu0 %1626
    %1628 = vrot.lane.b32.xlu0 %v1034, 64
    %v1629 = vpop.permute.xlu0 %1628
    %1638 = vrot.lane.b32.xlu0 %v1203, 80
    %v1639 = vpop.permute.xlu0 %1638
    %1640 = vrot.lane.b32.xlu0 %v1206, 80
    %v1641 = vpop.permute.xlu0 %1640
    %1642 = vrot.lane.b32.xlu0 %v1209, 80
    %v1643 = vpop.permute.xlu0 %1642
    %1644 = vrot.lane.b32.xlu0 %v1212, 80
    %v1645 = vpop.permute.xlu0 %1644
    %1654 = vrot.lane.b32.xlu0 %v1381, 96
    %v1655 = vpop.permute.xlu0 %1654
    %1656 = vrot.lane.b32.xlu0 %v1384, 96
    %v1657 = vpop.permute.xlu0 %1656
    %1658 = vrot.lane.b32.xlu0 %v1387, 96
    %v1659 = vpop.permute.xlu0 %1658
    %1660 = vrot.lane.b32.xlu0 %v1390, 96
    %v1661 = vpop.permute.xlu0 %1660
    %1670 = vrot.lane.b32.xlu0 %v1559, 112
    %v1671 = vpop.permute.xlu0 %1670
    %1672 = vrot.lane.b32.xlu0 %v1562, 112
    %v1673 = vpop.permute.xlu0 %1672
    %1674 = vrot.lane.b32.xlu0 %v1565, 112
    %v1675 = vpop.permute.xlu0 %1674
    %1676 = vrot.lane.b32.xlu0 %v1568, 112
    %v1677 = vpop.permute.xlu0 %1676
    %v1682 = vsel %vm33, %v305, %v1575
    %v1683 = vsel %vm33, %v308, %v1577
    %v1684 = vsel %vm33, %v311, %v1579
    %v1685 = vsel %vm33, %v314, %v1581
    %v1686 = vsel %vm230, %v1682, %v1591
    %v1687 = vsel %vm230, %v1683, %v1593
    %v1688 = vsel %vm230, %v1684, %v1595
    %v1689 = vsel %vm230, %v1685, %v1597
    %vm1690 = vcmask 392192
    %v1691 = vsel %vm1690, %v1686, %v1607
    %v1692 = vsel %vm1690, %v1687, %v1609
    %v1693 = vsel %vm1690, %v1688, %v1611
    %v1694 = vsel %vm1690, %v1689, %v1613
    %vm1695 = vcmask 523264
    %v1696 = vsel %vm1695, %v1691, %v1623
    %v1697 = vsel %vm1695, %v1692, %v1625
    %v1698 = vsel %vm1695, %v1693, %v1627
    %v1699 = vsel %vm1695, %v1694, %v1629
    %vm1700 = vcmask 654336
    %v1701 = vsel %vm1700, %v1696, %v1639
    %v1702 = vsel %vm1700, %v1697, %v1641
    %v1703 = vsel %vm1700, %v1698, %v1643
    %v1704 = vsel %vm1700, %v1699, %v1645
    %vm1705 = vcmask 785408
    %v1706 = vsel %vm1705, %v1701, %v1655
    %v1707 = vsel %vm1705, %v1702, %v1657
    %v1708 = vsel %vm1705, %v1703, %v1659
    %v1709 = vsel %vm1705, %v1704, %v1661
    %vm1710 = vcmask 916480
    %v1711 = vsel %vm1710, %v1706, %v1671
    %v1712 = vsel %vm1710, %v1707, %v1673
    %v1713 = vsel %vm1710, %v1708, %v1675
    %v1714 = vsel %vm1710, %v1709, %v1677
    %v1715 = vld [vmem:[%s5] sm:$0x1]
    %v1717 = vperm.slane %v1715, 0
    %v1719 = vadd.f32 %v1711, %v1717
    %v1720 = vadd.f32 %v1712, %v1717
    %v1721 = vadd.f32 %v1713, %v1717
    %v1722 = vadd.f32 %v1714, %v1717
    %v1723 = vmax.f32 %v1719, 0.0
    %v1724 = vmax.f32 %v1720, 0.0
    %v1725 = vmax.f32 %v1721, 0.0
    %v1726 = vmax.f32 %v1722, 0.0
    %1727 = vst [vmem:[#allocation2] sm:$0xff] %v1723
    %1728 = vst [vmem:[#allocation2 + $0x8] sm:$0xff] %v1724
    %1729 = vst [vmem:[#allocation2 + $0x10] sm:$0xff] %v1725
    %1730 = vst [vmem:[#allocation2 + $0x18] sm:$0xff] %v1726
    // Predicated region
    $region30: #{tpu_custom_call.1} parent=1 // pred_check
      _
    $region31: #{tpu_custom_call.1} parent=1 // pred_check_branch
      %1732 = sbr.rel (0) target = $region33
    $region32: #{tpu_custom_call.1} parent=1 // pred_region
      %1734 = vsyncadd [#allocation3], 0
      %s1735 = sshll.u32 [#allocation2], 4
      %s1736 = int_to_ptr.vmem [resolvable:$true] %s1735
      %s1737 = sshll.u32 %s7, 4
      %s1738 = int_to_ptr.hbm [resolvable:$true] %s1737
      %1743 = dma.vmem_to_hbm [thread:$0]  %s1736, 512, %s1738, [#allocation3], 128, 128, 8
    $region33: #{tpu_custom_call.1} parent=1 // pred_fallthru
      _
    // Predicated region
    $region34: #{tpu_custom_call.1} parent=1 // pred_check
      _
    $region35: #{tpu_custom_call.1} parent=1 // pred_check_branch
      %1745 = sbr.rel (0) target = $region37
    $region36: #{tpu_custom_call.1} parent=1 // pred_region
      %1747 = dma.done [#allocation3], 512
    $region37: #{tpu_custom_call.1} parent=1 // pred_fallthru
      _
    %1748 = vsyncpa [#allocation3], 1

</llo_original>
